<compile_context>
chip_gen: v5e
topology: v5e:2x2
jax: 0.10.0
libtpu: 0.0.40
codegen_flags: <defaults>
</compile_context>

<pallas_src>
import numpy as np
import jax
import jax.numpy as jnp
from jax.experimental import pallas as pl
from jax.experimental.pallas import tpu as pltpu

EPS = 1e-5


def _round_up(x, m):
    return ((x + m - 1) // m) * m


def _layernorm(x, g, b):
    m = jnp.mean(x, axis=-1, keepdims=True)
    v = jnp.mean(jnp.square(x - m), axis=-1, keepdims=True)
    return (x - m) * jax.lax.rsqrt(v + EPS) * g + b


def _gelu(x):
    # nn.GELU() default = exact erf GELU (kept for parity with the module).
    return 0.5 * x * (1.0 + jax.lax.erf(x * (1.0 / np.sqrt(2.0))))


# ----------------------------------------------------------------------------
# Kernel: fuse_fn on a tile of gathered class-token rows + fused masked scatter
# ----------------------------------------------------------------------------
def _fuse_forward_kernel(idx_ref,                     # (n_pad,) int32, SMEM (scalar prefetch)
                         p_ref, id_ref,               # (tn, D) prompt / id token tiles
                         ln1g_ref, ln1b_ref, w1a_ref, b1a_ref, w1b_ref, b1b_ref,
                         ln2g_ref, ln2b_ref, w2a_ref, b2a_ref, w2b_ref, b2b_ref,
                         ln3g_ref, ln3b_ref,
                         pe_hbm_ref,                  # full (B*S, D) prompt, HBM (aliased to out; unused)
                         out_hbm_ref,                 # full (B*S, D) output, HBM (same buffer via alias)
                         res_ref, sem):               # scratch: (tn, D) result tile + DMA semaphore
    del pe_hbm_ref
    tn, D = p_ref.shape
    bf16 = jnp.bfloat16

    p = p_ref[...].astype(jnp.float32)
    idv = id_ref[...].astype(jnp.float32)

    # ---- fuse_fn: cat([prompt, id], -1) -> LN1 -> MLP1 -> +prompt -> MLP2 -> LN3
    x2 = jnp.concatenate([p, idv], axis=-1)            # (tn, 2D), lane-dim concat
    x2n = _layernorm(x2, ln1g_ref[...], ln1b_ref[...])

    # MLP1 (no residual): one full-depth K=2D dot -> GELU -> Linear(D->D)
    h = jnp.dot(x2n.astype(bf16), w1a_ref[...],
                preferred_element_type=jnp.float32) + b1a_ref[...]
    h = _gelu(h)
    h = jnp.dot(h.astype(bf16), w1b_ref[...],
                preferred_element_type=jnp.float32) + b1b_ref[...]
    x = h + p                                           # "+ prompt_embeds"

    # MLP2 (residual): LN -> Linear -> GELU -> Linear -> +res
    res = x
    h = _layernorm(x, ln2g_ref[...], ln2b_ref[...])
    h = jnp.dot(h.astype(bf16), w2a_ref[...],
                preferred_element_type=jnp.float32) + b2a_ref[...]
    h = _gelu(h)
    h = jnp.dot(h.astype(bf16), w2b_ref[...],
                preferred_element_type=jnp.float32) + b2b_ref[...]
    x = h + res

    # Final LayerNorm -> lane-dense store into the VMEM result tile.
    res_ref[...] = _layernorm(x, ln3g_ref[...], ln3b_ref[...]).astype(res_ref.dtype)

    # ---- fused masked_scatter_: DMA each valid row to its class-token position
    # in the aliased full prompt tensor.  Rows never touched keep their original
    # prompt values because the output HBM buffer aliases the prompt input.
    base = pl.program_id(0) * tn

    @pl.loop(0, tn)
    def _scatter(r):
        row = idx_ref[base + r]                          # -1 marks padded rows

        @pl.when(row >= 0)
        def _():
            cp = pltpu.make_async_copy(res_ref.at[r], out_hbm_ref.at[row], sem)
            cp.start()
            cp.wait()


# ----------------------------------------------------------------------------
# Wrapper: tile selection, pallas_call plumbing
# ----------------------------------------------------------------------------
_WEIGHT_KEYS = ("ln1_g", "ln1_b", "w1a", "b1a", "w1b", "b1b",
                "ln2_g", "ln2_b", "w2a", "b2a", "w2b", "b2b",
                "ln3_g", "ln3_b")


def _chip_defaults():
    """Best-effort chip detection -> (tn_max, num_tensorcores_per_chip)."""
    tn_max, num_tc = 512, 1                      # v5e / v6e: 128 MiB VMEM, 1 TC
    try:
        info = pltpu.get_tpu_info()
        vmem = None
        for name in ("vmem_capacity_bytes", "vmem_size_bytes", "vmem_bytes"):
            vmem = getattr(info, name, None)
            if vmem:
                break
        if vmem is not None and int(vmem) <= (64 << 20):   # v7x-class: 64 MiB, 2 TCs
            tn_max, num_tc = 256, 2
    except Exception:
        pass
    return tn_max, num_tc


def _pick_tile(n, tn_max, num_tc):
    """Token tile (multiple of 16 for bf16 sublane packing) and padded row count."""
    n = max(int(n), 1)
    n16 = _round_up(n, 16)
    # Keep >= num_tc grid steps when there is enough work, so the "parallel"
    # token axis can shard across both TensorCores on v7x.
    min_steps = num_tc if n > 32 else 1
    steps = max(min_steps, pl.cdiv(n16, tn_max))
    tn = _round_up(pl.cdiv(n16, steps), 16)
    n_pad = tn * pl.cdiv(n, tn)
    return tn, n_pad


def fuse_forward_pallas(params, pe_flat, prompt_rows, id_rows, tok_idx):
    """fuse_fn on gathered class-token rows + fused scatter back into pe_flat.

    pe_flat:      (B*S, D) flattened prompt embeddings (aliased with the output)
    prompt_rows:  (N, D)   prompt rows at class-token positions
    id_rows:      (N, D)   valid id embeddings (one per class token)
    tok_idx:      (N,)     numpy int32 row indices of class tokens in pe_flat
    """
    BS, D = pe_flat.shape
    N = int(prompt_rows.shape[0])

    tn_max, num_tc = _chip_defaults()
    tn, n_pad = _pick_tile(N, tn_max, num_tc)
    pad = n_pad - N
    p = jnp.pad(prompt_rows, ((0, pad), (0, 0)))
    i = jnp.pad(id_rows, ((0, pad), (0, 0)))
    idx_np = np.full((n_pad,), -1, dtype=np.int32)
    idx_np[:N] = np.asarray(tok_idx, dtype=np.int32)
    idx = jnp.asarray(idx_np)

    tok_spec = pl.BlockSpec((tn, D), lambda g, s: (g, 0))

    def w_spec(arr):                 # all params are 2D; constant block index
        return pl.BlockSpec(arr.shape, lambda g, s: (0, 0))

    weights = [params[k] for k in _WEIGHT_KEYS]

    # VMEM budget: resident weights (x2 pipeline buffers) + double-buffered token
    # tiles + f32 intermediates (widest is the (tn, 2D) concat) + headroom.
    weight_bytes = sum(int(np.prod(w.shape)) * w.dtype.itemsize for w in weights)
    tile_bytes = tn * D * pe_flat.dtype.itemsize
    est = (2 * weight_bytes + 2 * 2 * tile_bytes + tile_bytes
           + 24 * tn * D * 4 + (2 << 20))
    vmem_limit = int(min(max(est, 16 << 20), 64 << 20))

    args = (idx, p, i, *weights, pe_flat)
    out = pl.pallas_call(
        _fuse_forward_kernel,
        out_shape=jax.ShapeDtypeStruct((BS, D), pe_flat.dtype),
        grid_spec=pltpu.PrefetchScalarGridSpec(
            num_scalar_prefetch=1,
            grid=(n_pad // tn,),
            in_specs=[tok_spec, tok_spec]
                     + [w_spec(w) for w in weights]
                     + [pl.BlockSpec(memory_space=pl.ANY)],     # full prompt, HBM
            out_specs=pl.BlockSpec(memory_space=pl.ANY),        # full output, HBM
            scratch_shapes=[pltpu.VMEM((tn, D), pe_flat.dtype),
                            pltpu.SemaphoreType.DMA],
        ),
        # Alias the full prompt tensor with the output: untouched rows keep their
        # original values; under jit+donation this removes the full-tensor copy.
        input_output_aliases={len(args) - 1: 0},
        compiler_params=pltpu.CompilerParams(
            dimension_semantics=("parallel",),
            vmem_limit_bytes=vmem_limit),
    )(*args)
    return out


def fuse_module_forward(params, prompt_embeds, id_embeds, class_tokens_mask_np):
    """Replicates FuseModule.forward.

    prompt_embeds:        (B, S, D) jnp array
    id_embeds:            (Bi, max_num_inputs, T, D) jnp array (Bi must be 1)
    class_tokens_mask_np: (B, S) host-static numpy bool mask
    """
    B, S, D = prompt_embeds.shape
    id_embeds = id_embeds.astype(prompt_embeds.dtype)
    Bi, max_num_inputs = id_embeds.shape[:2]
    # TODO(synk): the PyTorch module's own boolean indexing only supports a
    # single id-embedding batch; keep that restriction explicit here.
    assert Bi == 1, "FuseModule only supports a single id-embedding batch"

    mask_flat = np.asarray(class_tokens_mask_np, dtype=bool).reshape(-1)
    tok_idx = np.flatnonzero(mask_flat).astype(np.int32)
    num_inputs = int(mask_flat.sum())                 # PyTorch: global mask sum

    flat_id = id_embeds.reshape(-1, id_embeds.shape[-2], id_embeds.shape[-1])
    valid_rows = np.flatnonzero(np.arange(max_num_inputs) < num_inputs)
    valid_id = flat_id[valid_rows].reshape(-1, D)     # (num_valid*T, D)
    assert valid_id.shape[0] == num_inputs, f"{num_inputs} != {valid_id.shape[0]}"

    pe_flat = prompt_embeds.reshape(-1, D)
    image_token_rows = pe_flat[tok_idx]               # (N, D) static gather (small)
    # TODO(synk): for very large prompts this N x D gather could also move
    # in-kernel as per-row DMAs from the aliased buffer.

    out_flat = fuse_forward_pallas(params, pe_flat, image_token_rows, valid_id,
                                   tok_idx)
    return out_flat.reshape(B, S, D)


# ----------------------------------------------------------------------------
# Parameters (kernel-ready layout, preprocessed once) and pure-JAX reference
# ----------------------------------------------------------------------------
def init_params(key, D):
    """FuseModule parameters already in kernel layout:
       Linear weights pre-transposed from torch (out,in) to (in,out) and pre-cast
       to bf16 (MXU input dtype; accumulation stays f32 in-kernel); LayerNorm
       gammas/betas and biases kept f32 with shape (1, dim)."""
    ks = jax.random.split(key, 8)
    s = 0.05
    bf16 = jnp.bfloat16

    def lin(k, out_dim, in_dim):
        w = jax.random.normal(k, (out_dim, in_dim), jnp.float32) * s  # torch (out,in)
        return jnp.asarray(w.T, dtype=bf16)                           # -> (in,out) bf16

    return {
        "ln1_g": jnp.ones((1, 2 * D), jnp.float32),
        "ln1_b": jnp.zeros((1, 2 * D), jnp.float32),
        "w1a": lin(ks[0], D, 2 * D),                   # mlp1.fc1
        "b1a": jax.random.normal(ks[1], (1, D), jnp.float32) * s,
        "w1b": lin(ks[2], D, D),                       # mlp1.fc2
        "b1b": jax.random.normal(ks[3], (1, D), jnp.float32) * s,
        "ln2_g": jnp.ones((1, D), jnp.float32),
        "ln2_b": jnp.zeros((1, D), jnp.float32),
        "w2a": lin(ks[4], D, D),                       # mlp2.fc1
        "b2a": jax.random.normal(ks[5], (1, D), jnp.float32) * s,
        "w2b": lin(ks[6], D, D),                       # mlp2.fc2
        "b2b": jax.random.normal(ks[7], (1, D), jnp.float32) * s,
        "ln3_g": jnp.ones((1, D), jnp.float32),
        "ln3_b": jnp.zeros((1, D), jnp.float32),
    }


def _ref_fuse_fn(params, p, idv):
    # Mirrors the kernel math (bf16 matmul inputs, f32 accumulation).  Note: the
    # PyTorch module runs f32 matmuls; the 2e-3 tolerance below checks
    # self-consistency of the bf16-MXU variant, not bitwise parity with torch.
    bf16 = jnp.bfloat16
    x2 = jnp.concatenate([p, idv], axis=-1)
    x2n = _layernorm(x2, params["ln1_g"], params["ln1_b"])
    h = jnp.dot(x2n.astype(bf16), params["w1a"],
                preferred_element_type=jnp.float32) + params["b1a"]
    h = _gelu(h)
    h = jnp.dot(h.astype(bf16), params["w1b"],
                preferred_element_type=jnp.float32) + params["b1b"]
    x = h + p
    res = x
    h = _layernorm(x, params["ln2_g"], params["ln2_b"])
    h = jnp.dot(h.astype(bf16), params["w2a"],
                preferred_element_type=jnp.float32) + params["b2a"]
    h = _gelu(h)
    h = jnp.dot(h.astype(bf16), params["w2b"],
                preferred_element_type=jnp.float32) + params["b2b"]
    x = h + res
    return _layernorm(x, params["ln3_g"], params["ln3_b"])


if __name__ == "__main__":
    key = jax.random.PRNGKey(0)
    D = 128          # embed_dim (lane-dense: multiple of 128)
    B, S = 2, 16     # prompt batch, sequence length
    max_num_inputs, T = 8, 1

    k1, k2, k3 = jax.random.split(key, 3)
    params = init_params(k1, D)

    prompt_embeds = jax.random.normal(k2, (B, S, D), jnp.float32)
    id_embeds = jax.random.normal(k3, (1, max_num_inputs, T, D), jnp.float32)

    # 4 class tokens per sequence -> total 8 == max_num_inputs * T valid id rows
    class_tokens_mask = np.zeros((B, S), dtype=bool)
    class_tokens_mask[0, [2, 5, 9, 12]] = True
    class_tokens_mask[1, [1, 4, 8, 13]] = True

    out = fuse_module_forward(params, prompt_embeds, id_embeds, class_tokens_mask)
    out = jax.block_until_ready(out)

    # pure-JAX reference of the same fused path
    pe_flat = prompt_embeds.reshape(-1, D)
    tok_idx = np.flatnonzero(class_tokens_mask.reshape(-1))
    ref_rows = _ref_fuse_fn(params, pe_flat[tok_idx],
                            id_embeds.reshape(-1, D)[: len(tok_idx)])
    ref = pe_flat.at[tok_idx].set(ref_rows).reshape(B, S, D)
    np.testing.assert_allclose(np.asarray(out), np.asarray(ref),
                               atol=2e-3, rtol=2e-3)

    print("KERNEL_OK")
</pallas_src>

<mosaic_0001>
module attributes {stable_mosaic.version = 11 : i64} {
  func.func @_fuse_forward_kernel(%arg0: i32, %arg1: memref<16xi32, #tpu.memory_space<smem>>, %arg2: memref<16x128xf32, #tpu.memory_space<vmem>>, %arg3: memref<16x128xf32, #tpu.memory_space<vmem>>, %arg4: memref<1x256xf32, #tpu.memory_space<vmem>>, %arg5: memref<1x256xf32, #tpu.memory_space<vmem>>, %arg6: memref<256x128xbf16, #tpu.memory_space<vmem>>, %arg7: memref<1x128xf32, #tpu.memory_space<vmem>>, %arg8: memref<128x128xbf16, #tpu.memory_space<vmem>>, %arg9: memref<1x128xf32, #tpu.memory_space<vmem>>, %arg10: memref<1x128xf32, #tpu.memory_space<vmem>>, %arg11: memref<1x128xf32, #tpu.memory_space<vmem>>, %arg12: memref<128x128xbf16, #tpu.memory_space<vmem>>, %arg13: memref<1x128xf32, #tpu.memory_space<vmem>>, %arg14: memref<128x128xbf16, #tpu.memory_space<vmem>>, %arg15: memref<1x128xf32, #tpu.memory_space<vmem>>, %arg16: memref<1x128xf32, #tpu.memory_space<vmem>>, %arg17: memref<1x128xf32, #tpu.memory_space<vmem>>, %arg18: memref<32x128xf32, #tpu.memory_space<any>>, %arg19: memref<32x128xf32, #tpu.memory_space<any>>, %arg20: memref<16x128xf32, #tpu.memory_space<vmem>>, %arg21: memref<!tpu.dma_semaphore, #tpu.memory_space<semaphore_mem>>) attributes {dimension_semantics = [#tpu.dimension_semantics<parallel>], iteration_bounds = array<i64: 1>, scalar_prefetch = 1 : i64, scratch_operands = 2 : i64, tpu.core_type = #tpu.core_type<tc>, window_params = [{transform_indices = @transform_0, window_bounds = array<i64: 16, 128>}, {transform_indices = @transform_1, window_bounds = array<i64: 16, 128>}, {pipeline_mode = #tpu.pipeline_mode<synchronous>, transform_indices = @transform_2, window_bounds = array<i64: 1, 256>}, {pipeline_mode = #tpu.pipeline_mode<synchronous>, transform_indices = @transform_3, window_bounds = array<i64: 1, 256>}, {pipeline_mode = #tpu.pipeline_mode<synchronous>, transform_indices = @transform_4, window_bounds = array<i64: 256, 128>}, {pipeline_mode = #tpu.pipeline_mode<synchronous>, transform_indices = @transform_5, window_bounds = array<i64: 1, 128>}, {pipeline_mode = #tpu.pipeline_mode<synchronous>, transform_indices = @transform_6, window_bounds = array<i64: 128, 128>}, {pipeline_mode = #tpu.pipeline_mode<synchronous>, transform_indices = @transform_7, window_bounds = array<i64: 1, 128>}, {pipeline_mode = #tpu.pipeline_mode<synchronous>, transform_indices = @transform_8, window_bounds = array<i64: 1, 128>}, {pipeline_mode = #tpu.pipeline_mode<synchronous>, transform_indices = @transform_9, window_bounds = array<i64: 1, 128>}, {pipeline_mode = #tpu.pipeline_mode<synchronous>, transform_indices = @transform_10, window_bounds = array<i64: 128, 128>}, {pipeline_mode = #tpu.pipeline_mode<synchronous>, transform_indices = @transform_11, window_bounds = array<i64: 1, 128>}, {pipeline_mode = #tpu.pipeline_mode<synchronous>, transform_indices = @transform_12, window_bounds = array<i64: 128, 128>}, {pipeline_mode = #tpu.pipeline_mode<synchronous>, transform_indices = @transform_13, window_bounds = array<i64: 1, 128>}, {pipeline_mode = #tpu.pipeline_mode<synchronous>, transform_indices = @transform_14, window_bounds = array<i64: 1, 128>}, {pipeline_mode = #tpu.pipeline_mode<synchronous>, transform_indices = @transform_15, window_bounds = array<i64: 1, 128>}, {}, {}]} {
    %c0 = arith.constant 0 : index
    %c0_0 = arith.constant 0 : index
    %0 = vector.load %arg2[%c0, %c0_0] : memref<16x128xf32, #tpu.memory_space<vmem>>, vector<16x128xf32>
    %c0_1 = arith.constant 0 : index
    %c0_2 = arith.constant 0 : index
    %1 = vector.load %arg3[%c0_1, %c0_2] : memref<16x128xf32, #tpu.memory_space<vmem>>, vector<16x128xf32>
    %2 = tpu.concatenate %0, %1 in 1 : vector<16x128xf32>, vector<16x128xf32> -> vector<16x256xf32>
    %c0_3 = arith.constant 0 : index
    %c0_4 = arith.constant 0 : index
    %3 = vector.load %arg4[%c0_3, %c0_4] : memref<1x256xf32, #tpu.memory_space<vmem>>, vector<1x256xf32>
    %c0_5 = arith.constant 0 : index
    %c0_6 = arith.constant 0 : index
    %4 = vector.load %arg5[%c0_5, %c0_6] : memref<1x256xf32, #tpu.memory_space<vmem>>, vector<1x256xf32>
    %cst = arith.constant dense<0.000000e+00> : vector<16xf32>
    %5 = vector.multi_reduction <add>, %2, %cst [1] : vector<16x256xf32> to vector<16xf32>
    %6 = vector.shape_cast %5 : vector<16xf32> to vector<16x1xf32>
    %cst_7 = arith.constant 2.560000e+02 : f32
    %7 = vector.broadcast %cst_7 : f32 to vector<16x1xf32>
    %8 = arith.divf %6, %7 : vector<16x1xf32>
    %9 = vector.broadcast %8 : vector<16x1xf32> to vector<16x256xf32>
    %10 = arith.subf %2, %9 : vector<16x256xf32>
    %11 = arith.mulf %10, %10 : vector<16x256xf32>
    %cst_8 = arith.constant dense<0.000000e+00> : vector<16xf32>
    %12 = vector.multi_reduction <add>, %11, %cst_8 [1] : vector<16x256xf32> to vector<16xf32>
    %13 = vector.shape_cast %12 : vector<16xf32> to vector<16x1xf32>
    %cst_9 = arith.constant 2.560000e+02 : f32
    %14 = vector.broadcast %cst_9 : f32 to vector<16x1xf32>
    %15 = arith.divf %13, %14 : vector<16x1xf32>
    %16 = vector.broadcast %8 : vector<16x1xf32> to vector<16x256xf32>
    %17 = arith.subf %2, %16 : vector<16x256xf32>
    %cst_10 = arith.constant 9.99999974E-6 : f32
    %18 = vector.broadcast %cst_10 : f32 to vector<16x1xf32>
    %19 = arith.addf %15, %18 : vector<16x1xf32>
    %20 = math.rsqrt %19 : vector<16x1xf32>
    %21 = vector.broadcast %20 : vector<16x1xf32> to vector<16x256xf32>
    %22 = arith.mulf %17, %21 : vector<16x256xf32>
    %23 = vector.broadcast %3 : vector<1x256xf32> to vector<16x256xf32>
    %24 = arith.mulf %22, %23 : vector<16x256xf32>
    %25 = vector.broadcast %4 : vector<1x256xf32> to vector<16x256xf32>
    %26 = arith.addf %24, %25 : vector<16x256xf32>
    %27 = arith.truncf %26 : vector<16x256xf32> to vector<16x256xbf16>
    %c0_11 = arith.constant 0 : index
    %c0_12 = arith.constant 0 : index
    %28 = vector.load %arg6[%c0_11, %c0_12] : memref<256x128xbf16, #tpu.memory_space<vmem>>, vector<256x128xbf16>
    %cst_13 = arith.constant dense<0.000000e+00> : vector<16x128xf32>
    %29 = tpu.matmul %27, %28, %cst_13 {dimension_numbers = #tpu.dot_dimension_numbers<[1], [0], [0], [1], [0, 0, 1, 1], [], []>} : vector<16x256xbf16>, vector<256x128xbf16>, vector<16x128xf32> -> vector<16x128xf32>
    %c0_14 = arith.constant 0 : index
    %c0_15 = arith.constant 0 : index
    %30 = vector.load %arg7[%c0_14, %c0_15] : memref<1x128xf32, #tpu.memory_space<vmem>>, vector<1x128xf32>
    %31 = vector.broadcast %30 : vector<1x128xf32> to vector<16x128xf32>
    %32 = arith.addf %29, %31 : vector<16x128xf32>
    %cst_16 = arith.constant 5.000000e-01 : f32
    %33 = vector.broadcast %cst_16 : f32 to vector<16x128xf32>
    %34 = arith.mulf %33, %32 : vector<16x128xf32>
    %cst_17 = arith.constant 0.707106769 : f32
    %35 = vector.broadcast %cst_17 : f32 to vector<16x128xf32>
    %36 = arith.mulf %32, %35 : vector<16x128xf32>
    %37 = math.erf %36 : vector<16x128xf32>
    %cst_18 = arith.constant 1.000000e+00 : f32
    %38 = vector.broadcast %cst_18 : f32 to vector<16x128xf32>
    %39 = arith.addf %38, %37 : vector<16x128xf32>
    %40 = arith.mulf %34, %39 : vector<16x128xf32>
    %41 = arith.truncf %40 : vector<16x128xf32> to vector<16x128xbf16>
    %c0_19 = arith.constant 0 : index
    %c0_20 = arith.constant 0 : index
    %42 = vector.load %arg8[%c0_19, %c0_20] : memref<128x128xbf16, #tpu.memory_space<vmem>>, vector<128x128xbf16>
    %cst_21 = arith.constant dense<0.000000e+00> : vector<16x128xf32>
    %43 = tpu.matmul %41, %42, %cst_21 {dimension_numbers = #tpu.dot_dimension_numbers<[1], [0], [0], [1], [0, 0, 1, 1], [], []>} : vector<16x128xbf16>, vector<128x128xbf16>, vector<16x128xf32> -> vector<16x128xf32>
    %c0_22 = arith.constant 0 : index
    %c0_23 = arith.constant 0 : index
    %44 = vector.load %arg9[%c0_22, %c0_23] : memref<1x128xf32, #tpu.memory_space<vmem>>, vector<1x128xf32>
    %45 = vector.broadcast %44 : vector<1x128xf32> to vector<16x128xf32>
    %46 = arith.addf %43, %45 : vector<16x128xf32>
    %47 = arith.addf %46, %0 : vector<16x128xf32>
    %c0_24 = arith.constant 0 : index
    %c0_25 = arith.constant 0 : index
    %48 = vector.load %arg10[%c0_24, %c0_25] : memref<1x128xf32, #tpu.memory_space<vmem>>, vector<1x128xf32>
    %c0_26 = arith.constant 0 : index
    %c0_27 = arith.constant 0 : index
    %49 = vector.load %arg11[%c0_26, %c0_27] : memref<1x128xf32, #tpu.memory_space<vmem>>, vector<1x128xf32>
    %cst_28 = arith.constant dense<0.000000e+00> : vector<16xf32>
    %50 = vector.multi_reduction <add>, %47, %cst_28 [1] : vector<16x128xf32> to vector<16xf32>
    %51 = vector.shape_cast %50 : vector<16xf32> to vector<16x1xf32>
    %cst_29 = arith.constant 1.280000e+02 : f32
    %52 = vector.broadcast %cst_29 : f32 to vector<16x1xf32>
    %53 = arith.divf %51, %52 : vector<16x1xf32>
    %54 = vector.broadcast %53 : vector<16x1xf32> to vector<16x128xf32>
    %55 = arith.subf %47, %54 : vector<16x128xf32>
    %56 = arith.mulf %55, %55 : vector<16x128xf32>
    %cst_30 = arith.constant dense<0.000000e+00> : vector<16xf32>
    %57 = vector.multi_reduction <add>, %56, %cst_30 [1] : vector<16x128xf32> to vector<16xf32>
    %58 = vector.shape_cast %57 : vector<16xf32> to vector<16x1xf32>
    %cst_31 = arith.constant 1.280000e+02 : f32
    %59 = vector.broadcast %cst_31 : f32 to vector<16x1xf32>
    %60 = arith.divf %58, %59 : vector<16x1xf32>
    %61 = vector.broadcast %53 : vector<16x1xf32> to vector<16x128xf32>
    %62 = arith.subf %47, %61 : vector<16x128xf32>
    %cst_32 = arith.constant 9.99999974E-6 : f32
    %63 = vector.broadcast %cst_32 : f32 to vector<16x1xf32>
    %64 = arith.addf %60, %63 : vector<16x1xf32>
    %65 = math.rsqrt %64 : vector<16x1xf32>
    %66 = vector.broadcast %65 : vector<16x1xf32> to vector<16x128xf32>
    %67 = arith.mulf %62, %66 : vector<16x128xf32>
    %68 = vector.broadcast %48 : vector<1x128xf32> to vector<16x128xf32>
    %69 = arith.mulf %67, %68 : vector<16x128xf32>
    %70 = vector.broadcast %49 : vector<1x128xf32> to vector<16x128xf32>
    %71 = arith.addf %69, %70 : vector<16x128xf32>
    %72 = arith.truncf %71 : vector<16x128xf32> to vector<16x128xbf16>
    %c0_33 = arith.constant 0 : index
    %c0_34 = arith.constant 0 : index
    %73 = vector.load %arg12[%c0_33, %c0_34] : memref<128x128xbf16, #tpu.memory_space<vmem>>, vector<128x128xbf16>
    %cst_35 = arith.constant dense<0.000000e+00> : vector<16x128xf32>
    %74 = tpu.matmul %72, %73, %cst_35 {dimension_numbers = #tpu.dot_dimension_numbers<[1], [0], [0], [1], [0, 0, 1, 1], [], []>} : vector<16x128xbf16>, vector<128x128xbf16>, vector<16x128xf32> -> vector<16x128xf32>
    %c0_36 = arith.constant 0 : index
    %c0_37 = arith.constant 0 : index
    %75 = vector.load %arg13[%c0_36, %c0_37] : memref<1x128xf32, #tpu.memory_space<vmem>>, vector<1x128xf32>
    %76 = vector.broadcast %75 : vector<1x128xf32> to vector<16x128xf32>
    %77 = arith.addf %74, %76 : vector<16x128xf32>
    %cst_38 = arith.constant 5.000000e-01 : f32
    %78 = vector.broadcast %cst_38 : f32 to vector<16x128xf32>
    %79 = arith.mulf %78, %77 : vector<16x128xf32>
    %cst_39 = arith.constant 0.707106769 : f32
    %80 = vector.broadcast %cst_39 : f32 to vector<16x128xf32>
    %81 = arith.mulf %77, %80 : vector<16x128xf32>
    %82 = math.erf %81 : vector<16x128xf32>
    %cst_40 = arith.constant 1.000000e+00 : f32
    %83 = vector.broadcast %cst_40 : f32 to vector<16x128xf32>
    %84 = arith.addf %83, %82 : vector<16x128xf32>
    %85 = arith.mulf %79, %84 : vector<16x128xf32>
    %86 = arith.truncf %85 : vector<16x128xf32> to vector<16x128xbf16>
    %c0_41 = arith.constant 0 : index
    %c0_42 = arith.constant 0 : index
    %87 = vector.load %arg14[%c0_41, %c0_42] : memref<128x128xbf16, #tpu.memory_space<vmem>>, vector<128x128xbf16>
    %cst_43 = arith.constant dense<0.000000e+00> : vector<16x128xf32>
    %88 = tpu.matmul %86, %87, %cst_43 {dimension_numbers = #tpu.dot_dimension_numbers<[1], [0], [0], [1], [0, 0, 1, 1], [], []>} : vector<16x128xbf16>, vector<128x128xbf16>, vector<16x128xf32> -> vector<16x128xf32>
    %c0_44 = arith.constant 0 : index
    %c0_45 = arith.constant 0 : index
    %89 = vector.load %arg15[%c0_44, %c0_45] : memref<1x128xf32, #tpu.memory_space<vmem>>, vector<1x128xf32>
    %90 = vector.broadcast %89 : vector<1x128xf32> to vector<16x128xf32>
    %91 = arith.addf %88, %90 : vector<16x128xf32>
    %92 = arith.addf %91, %47 : vector<16x128xf32>
    %c0_46 = arith.constant 0 : index
    %c0_47 = arith.constant 0 : index
    %93 = vector.load %arg16[%c0_46, %c0_47] : memref<1x128xf32, #tpu.memory_space<vmem>>, vector<1x128xf32>
    %c0_48 = arith.constant 0 : index
    %c0_49 = arith.constant 0 : index
    %94 = vector.load %arg17[%c0_48, %c0_49] : memref<1x128xf32, #tpu.memory_space<vmem>>, vector<1x128xf32>
    %cst_50 = arith.constant dense<0.000000e+00> : vector<16xf32>
    %95 = vector.multi_reduction <add>, %92, %cst_50 [1] : vector<16x128xf32> to vector<16xf32>
    %96 = vector.shape_cast %95 : vector<16xf32> to vector<16x1xf32>
    %cst_51 = arith.constant 1.280000e+02 : f32
    %97 = vector.broadcast %cst_51 : f32 to vector<16x1xf32>
    %98 = arith.divf %96, %97 : vector<16x1xf32>
    %99 = vector.broadcast %98 : vector<16x1xf32> to vector<16x128xf32>
    %100 = arith.subf %92, %99 : vector<16x128xf32>
    %101 = arith.mulf %100, %100 : vector<16x128xf32>
    %cst_52 = arith.constant dense<0.000000e+00> : vector<16xf32>
    %102 = vector.multi_reduction <add>, %101, %cst_52 [1] : vector<16x128xf32> to vector<16xf32>
    %103 = vector.shape_cast %102 : vector<16xf32> to vector<16x1xf32>
    %cst_53 = arith.constant 1.280000e+02 : f32
    %104 = vector.broadcast %cst_53 : f32 to vector<16x1xf32>
    %105 = arith.divf %103, %104 : vector<16x1xf32>
    %106 = vector.broadcast %98 : vector<16x1xf32> to vector<16x128xf32>
    %107 = arith.subf %92, %106 : vector<16x128xf32>
    %cst_54 = arith.constant 9.99999974E-6 : f32
    %108 = vector.broadcast %cst_54 : f32 to vector<16x1xf32>
    %109 = arith.addf %105, %108 : vector<16x1xf32>
    %110 = math.rsqrt %109 : vector<16x1xf32>
    %111 = vector.broadcast %110 : vector<16x1xf32> to vector<16x128xf32>
    %112 = arith.mulf %107, %111 : vector<16x128xf32>
    %113 = vector.broadcast %93 : vector<1x128xf32> to vector<16x128xf32>
    %114 = arith.mulf %112, %113 : vector<16x128xf32>
    %115 = vector.broadcast %94 : vector<1x128xf32> to vector<16x128xf32>
    %116 = arith.addf %114, %115 : vector<16x128xf32>
    %c0_55 = arith.constant 0 : index
    %c0_56 = arith.constant 0 : index
    %117 = vector.load %arg20[%c0_55, %c0_56] : memref<16x128xf32, #tpu.memory_space<vmem>>, vector<16x128xf32>
    tpu.vector_store %arg20[%c0_55, %c0_56], %116 {strides = array<i32>} : memref<16x128xf32, #tpu.memory_space<vmem>>, vector<16x128xf32>,
    %c16_i32 = arith.constant 16 : i32
    %118 = arith.muli %arg0, %c16_i32 : i32
    %c0_i32 = arith.constant 0 : i32
    %c16_i32_57 = arith.constant 16 : i32
    %119 = arith.addi %c0_i32, %c16_i32_57 : i32
    %c1_i32 = arith.constant 1 : i32
    scf.for %arg22 = %c0_i32 to %119 step %c1_i32  : i32 {
      %c1_i32_59 = arith.constant 1 : i32
      %120 = arith.muli %arg22, %c1_i32_59 : i32
      %c0_i32_60 = arith.constant 0 : i32
      %121 = arith.addi %c0_i32_60, %120 : i32
      %122 = arith.addi %118, %121 : i32
      %123 = arith.index_cast %122 : i32 to index
      %124 = memref.load %arg1[%123] : memref<16xi32, #tpu.memory_space<smem>>
      %c0_i32_61 = arith.constant 0 : i32
      %125 = arith.cmpi sge, %124, %c0_i32_61 : i32
      %126 = arith.extui %125 : i1 to i32
      %c0_i32_62 = arith.constant 0 : i32
      %127 = arith.cmpi ne, %126, %c0_i32_62 : i32
      scf.if %127 {
        %c0_i32_63 = arith.constant 0 : i32
        %128 = tpu.memref_slice %arg20[%121, %c0_i32_63] : memref<16x128xf32, #tpu.memory_space<vmem>> -> memref<1x128xf32, #tpu.memory_space<vmem>>
        %129 = tpu.memref_squeeze %128 : memref<1x128xf32, #tpu.memory_space<vmem>> -> memref<128xf32, #tpu.memory_space<vmem>>
        %c0_i32_64 = arith.constant 0 : i32
        %130 = tpu.memref_slice %arg19[%124, %c0_i32_64] : memref<32x128xf32, #tpu.memory_space<any>> -> memref<1x128xf32, #tpu.memory_space<any>>
        %131 = tpu.memref_squeeze %130 : memref<1x128xf32, #tpu.memory_space<any>> -> memref<128xf32, #tpu.memory_space<any>>
        tpu.enqueue_dma source(%129 : memref<128xf32, #tpu.memory_space<vmem>>) target(%131 : memref<128xf32, #tpu.memory_space<any>>) target_semaphore(%arg21 : memref<!tpu.dma_semaphore, #tpu.memory_space<semaphore_mem>>)
        %c0_i32_65 = arith.constant 0 : i32
        %132 = tpu.memref_slice %arg20[%121, %c0_i32_65] : memref<16x128xf32, #tpu.memory_space<vmem>> -> memref<1x128xf32, #tpu.memory_space<vmem>>
        %133 = tpu.memref_squeeze %132 : memref<1x128xf32, #tpu.memory_space<vmem>> -> memref<128xf32, #tpu.memory_space<vmem>>
        %c0_i32_66 = arith.constant 0 : i32
        %134 = tpu.memref_slice %arg19[%124, %c0_i32_66] : memref<32x128xf32, #tpu.memory_space<any>> -> memref<1x128xf32, #tpu.memory_space<any>>
        %135 = tpu.memref_squeeze %134 : memref<1x128xf32, #tpu.memory_space<any>> -> memref<128xf32, #tpu.memory_space<any>>
        tpu.wait_dma2 semaphore(%arg21 : memref<!tpu.dma_semaphore, #tpu.memory_space<semaphore_mem>>) src(%133 : memref<128xf32, #tpu.memory_space<vmem>>) dst(%135 : memref<128xf32, #tpu.memory_space<any>>)
      } else {
      }
    }
    %c16_i32_58 = arith.constant 16 : i32
    return
  }
  func.func @transform_0(%arg0: i32, %arg1: memref<16xi32, #tpu.memory_space<smem>>) -> (i32, i32) {
    %c0_i32 = arith.constant 0 : i32
    %c0_i32_0 = arith.constant 0 : i32
    return %arg0, %c0_i32 : i32, i32
  }
  func.func @transform_1(%arg0: i32, %arg1: memref<16xi32, #tpu.memory_space<smem>>) -> (i32, i32) {
    %c0_i32 = arith.constant 0 : i32
    %c0_i32_0 = arith.constant 0 : i32
    return %arg0, %c0_i32 : i32, i32
  }
  func.func @transform_2(%arg0: i32, %arg1: memref<16xi32, #tpu.memory_space<smem>>) -> (i32, i32) {
    %c0_i32 = arith.constant 0 : i32
    %c0_i32_0 = arith.constant 0 : i32
    %c0_i32_1 = arith.constant 0 : i32
    return %c0_i32, %c0_i32_0 : i32, i32
  }
  func.func @transform_3(%arg0: i32, %arg1: memref<16xi32, #tpu.memory_space<smem>>) -> (i32, i32) {
    %c0_i32 = arith.constant 0 : i32
    %c0_i32_0 = arith.constant 0 : i32
    %c0_i32_1 = arith.constant 0 : i32
    return %c0_i32, %c0_i32_0 : i32, i32
  }
  func.func @transform_4(%arg0: i32, %arg1: memref<16xi32, #tpu.memory_space<smem>>) -> (i32, i32) {
    %c0_i32 = arith.constant 0 : i32
    %c0_i32_0 = arith.constant 0 : i32
    %c0_i32_1 = arith.constant 0 : i32
    return %c0_i32, %c0_i32_0 : i32, i32
  }
  func.func @transform_5(%arg0: i32, %arg1: memref<16xi32, #tpu.memory_space<smem>>) -> (i32, i32) {
    %c0_i32 = arith.constant 0 : i32
    %c0_i32_0 = arith.constant 0 : i32
    %c0_i32_1 = arith.constant 0 : i32
    return %c0_i32, %c0_i32_0 : i32, i32
  }
  func.func @transform_6(%arg0: i32, %arg1: memref<16xi32, #tpu.memory_space<smem>>) -> (i32, i32) {
    %c0_i32 = arith.constant 0 : i32
    %c0_i32_0 = arith.constant 0 : i32
    %c0_i32_1 = arith.constant 0 : i32
    return %c0_i32, %c0_i32_0 : i32, i32
  }
  func.func @transform_7(%arg0: i32, %arg1: memref<16xi32, #tpu.memory_space<smem>>) -> (i32, i32) {
    %c0_i32 = arith.constant 0 : i32
    %c0_i32_0 = arith.constant 0 : i32
    %c0_i32_1 = arith.constant 0 : i32
    return %c0_i32, %c0_i32_0 : i32, i32
  }
  func.func @transform_8(%arg0: i32, %arg1: memref<16xi32, #tpu.memory_space<smem>>) -> (i32, i32) {
    %c0_i32 = arith.constant 0 : i32
    %c0_i32_0 = arith.constant 0 : i32
    %c0_i32_1 = arith.constant 0 : i32
    return %c0_i32, %c0_i32_0 : i32, i32
  }
  func.func @transform_9(%arg0: i32, %arg1: memref<16xi32, #tpu.memory_space<smem>>) -> (i32, i32) {
    %c0_i32 = arith.constant 0 : i32
    %c0_i32_0 = arith.constant 0 : i32
    %c0_i32_1 = arith.constant 0 : i32
    return %c0_i32, %c0_i32_0 : i32, i32
  }
  func.func @transform_10(%arg0: i32, %arg1: memref<16xi32, #tpu.memory_space<smem>>) -> (i32, i32) {
    %c0_i32 = arith.constant 0 : i32
    %c0_i32_0 = arith.constant 0 : i32
    %c0_i32_1 = arith.constant 0 : i32
    return %c0_i32, %c0_i32_0 : i32, i32
  }
  func.func @transform_11(%arg0: i32, %arg1: memref<16xi32, #tpu.memory_space<smem>>) -> (i32, i32) {
    %c0_i32 = arith.constant 0 : i32
    %c0_i32_0 = arith.constant 0 : i32
    %c0_i32_1 = arith.constant 0 : i32
    return %c0_i32, %c0_i32_0 : i32, i32
  }
  func.func @transform_12(%arg0: i32, %arg1: memref<16xi32, #tpu.memory_space<smem>>) -> (i32, i32) {
    %c0_i32 = arith.constant 0 : i32
    %c0_i32_0 = arith.constant 0 : i32
    %c0_i32_1 = arith.constant 0 : i32
    return %c0_i32, %c0_i32_0 : i32, i32
  }
  func.func @transform_13(%arg0: i32, %arg1: memref<16xi32, #tpu.memory_space<smem>>) -> (i32, i32) {
    %c0_i32 = arith.constant 0 : i32
    %c0_i32_0 = arith.constant 0 : i32
    %c0_i32_1 = arith.constant 0 : i32
    return %c0_i32, %c0_i32_0 : i32, i32
  }
  func.func @transform_14(%arg0: i32, %arg1: memref<16xi32, #tpu.memory_space<smem>>) -> (i32, i32) {
    %c0_i32 = arith.constant 0 : i32
    %c0_i32_0 = arith.constant 0 : i32
    %c0_i32_1 = arith.constant 0 : i32
    return %c0_i32, %c0_i32_0 : i32, i32
  }
  func.func @transform_15(%arg0: i32, %arg1: memref<16xi32, #tpu.memory_space<smem>>) -> (i32, i32) {
    %c0_i32 = arith.constant 0 : i32
    %c0_i32_0 = arith.constant 0 : i32
    %c0_i32_1 = arith.constant 0 : i32
    return %c0_i32, %c0_i32_0 : i32, i32
  }
}

</mosaic_0001>

<llo_original>
// kernel: tpu_custom_call.1
$region0: #{tpu_custom_call.1}
  #allocation0 [shape = 'u32[]', space=smem, size = 0x4, offset = 0x4, fixed_abs, tag = 'smem constant byte address 0x4 - core index']
  #allocation1 [shape = 'u32[72,128]{1,0:T(1,128)}', space=vmem, size = 0x9000, scoped, tag = 'internal scratch']
  #allocation2 [shape = 'f32[16,128]{1,0:T(8,128)}', space=vmem, size = 0x2000, scoped, tag = 'scratch operand']
  #allocation3 [shape = 's32[1]{0}', space=sflag, size = 0x4, scoped, tag = 'scratch operand']
  #allocation4 [shape = 's32[1]{0}', space=sflag, size = 0x4, scoped, tag = 'scoped memory for tpu_custom_call.1']
  #allocation5 [shape = 'u8[512]{0}', space=smem, size = 0x200, scoped, tag = 'prefetched SMEM operand 0']
  #allocation20 [shape = 's32[]', space=sflag, size = 0x4, offset = 0, fixed_abs, tag = 'sflag constant byte address 0x0 - dummy sync flag']
  #allocation21 [shape = 's32[]', space=sflag, size = 0x4, offset = 0, fixed_abs, tag = 'sflag constant byte address 0x0 - dummy sync flag']
  #allocation22 [shape = 'u32[]', space=smem, size = 0x4, offset = 0x44, fixed_abs, tag = 'smem constant byte address 0x44 - assertion arg 0']
  #allocation23 [shape = 'u32[]', space=smem, size = 0x4, offset = 0x48, fixed_abs, tag = 'smem constant byte address 0x48 - assertion arg 1']
  %s0 = inlined_call_operand.vmem [shape: s32[16], index: 0, kind: input, shape index: {}]
  %s1 = inlined_call_operand.hbm [shape: f32[16,128], index: 1, kind: input, shape index: {}]
  %s2 = inlined_call_operand.hbm [shape: f32[16,128], index: 2, kind: input, shape index: {}]
  %s3 = inlined_call_operand.vmem [shape: f32[1,256], index: 3, kind: input, shape index: {}]
  %s4 = inlined_call_operand.vmem [shape: f32[1,256], index: 4, kind: input, shape index: {}]
  %s5 = inlined_call_operand.hbm [shape: bf16[256,128], index: 5, kind: input, shape index: {}]
  %s6 = inlined_call_operand.vmem [shape: f32[1,128], index: 6, kind: input, shape index: {}]
  %s7 = inlined_call_operand.vmem [shape: bf16[128,128], index: 7, kind: input, shape index: {}]
  %s8 = inlined_call_operand.vmem [shape: f32[1,128], index: 8, kind: input, shape index: {}]
  %s9 = inlined_call_operand.vmem [shape: f32[1,128], index: 9, kind: input, shape index: {}]
  %s10 = inlined_call_operand.vmem [shape: f32[1,128], index: 10, kind: input, shape index: {}]
  %s11 = inlined_call_operand.hbm [shape: bf16[128,128], index: 11, kind: input, shape index: {}]
  %s12 = inlined_call_operand.hbm [shape: f32[1,128], index: 12, kind: input, shape index: {}]
  %s13 = inlined_call_operand.hbm [shape: bf16[128,128], index: 13, kind: input, shape index: {}]
  %s14 = inlined_call_operand.hbm [shape: f32[1,128], index: 14, kind: input, shape index: {}]
  %s15 = inlined_call_operand.hbm [shape: f32[1,128], index: 15, kind: input, shape index: {}]
  %s16 = inlined_call_operand.hbm [shape: f32[1,128], index: 16, kind: input, shape index: {}]
  %s17 = inlined_call_operand.hbm [shape: f32[32,128], index: 17, kind: input, shape index: {}, may-alias: {17,18}]
  %s18 = inlined_call_operand.hbm [shape: f32[32,128], index: 18, kind: output, shape index: {}, may-alias: {17,18}]
  %s19 = sld [smem:[#allocation0]]
  $region117: #{tpu_custom_call.1} parent=0
    _
  %s21 = ssub.s32 1, %s19
  %s22 = scalar_select 0, %s21, %s19
  %s24 = sshll.u32 %s0, 4
  %s25 = int_to_ptr.vmem [resolvable:$true] %s24
  %27 = dma.vmem_to_smem %s25, 16, [#allocation5], [#allocation4]
  %29 = dma.done [#allocation4], 16
  %30 = sfence
  $region1: #{tpu_custom_call.1} parent=0
    #allocation6 [shape = 'u8[8192]{0}', space=vmem, size = 0x2000, scoped, tag = 'input window, operand 1, single buffered']
    #allocation7 [shape = 's32[1]{0}', space=sflag, size = 0x4, scoped, tag = 'scoped memory for tpu_custom_call.1']
    #allocation8 [shape = 'u8[8192]{0}', space=vmem, size = 0x2000, scoped, tag = 'input window, operand 2, single buffered']
    #allocation9 [shape = 's32[1]{0}', space=sflag, size = 0x4, scoped, tag = 'scoped memory for tpu_custom_call.1']
    #allocation10 [shape = 'u8[65536]{0}', space=vmem, size = 0x10000, scoped, tag = 'input window, operand 5, single buffered']
    #allocation11 [shape = 'u8[32768]{0}', space=vmem, size = 0x8000, scoped, tag = 'input window, operand 11, single buffered']
    #allocation12 [shape = 's32[1]{0}', space=sflag, size = 0x4, scoped, tag = 'scoped memory for tpu_custom_call.1']
    #allocation13 [shape = 'u8[512]{0}', space=vmem, size = 0x400, scoped, tag = 'input window, operand 12, single buffered']
    #allocation14 [shape = 'u8[32768]{0}', space=vmem, size = 0x8000, scoped, tag = 'input window, operand 13, single buffered']
    #allocation15 [shape = 's32[1]{0}', space=sflag, size = 0x4, scoped, tag = 'scoped memory for tpu_custom_call.1']
    #allocation16 [shape = 'u8[512]{0}', space=vmem, size = 0x400, scoped, tag = 'input window, operand 14, single buffered']
    #allocation17 [shape = 'u8[512]{0}', space=vmem, size = 0x400, scoped, tag = 'input window, operand 15, single buffered']
    #allocation18 [shape = 's32[1]{0}', space=sflag, size = 0x4, scoped, tag = 'scoped memory for tpu_custom_call.1']
    #allocation19 [shape = 'u8[512]{0}', space=vmem, size = 0x400, scoped, tag = 'input window, operand 16, single buffered']
    %31 = vsyncpa [#allocation7], 0
    %32 = vsyncpa [#allocation9], 0
    %33 = vsyncpa [#allocation12], 0
    %34 = vsyncpa [#allocation15], 0
    %35 = vsyncpa [#allocation18], 0
    // Predicated region
    $region2: #{tpu_custom_call.1} parent=1 // pred_check
      _
    $region3: #{tpu_custom_call.1} parent=1 // pred_check_branch
      %37 = sbr.rel (0) target = $region5
    $region4: #{tpu_custom_call.1} parent=1 // pred_region
      %39 = vsyncadd [#allocation7], 0
      %s40 = sshll.u32 %s1, 4
      %s41 = int_to_ptr.hbm [resolvable:$true] %s40
      %s42 = sshll.u32 [#allocation6], 4
      %s43 = int_to_ptr.vmem [resolvable:$true] %s42
      %48 = dma.hbm_to_vmem [thread:$0]  %s41, 256, %s43, [#allocation7], 128, 128, 8
    $region5: #{tpu_custom_call.1} parent=1 // pred_fallthru
      _
    // Predicated region
    $region6: #{tpu_custom_call.1} parent=1 // pred_check
      _
    $region7: #{tpu_custom_call.1} parent=1 // pred_check_branch
      %50 = sbr.rel (0) target = $region9
    $region8: #{tpu_custom_call.1} parent=1 // pred_region
      %52 = vsyncadd [#allocation9], 0
      %s53 = sshll.u32 %s2, 4
      %s54 = int_to_ptr.hbm [resolvable:$true] %s53
      %s55 = sshll.u32 [#allocation8], 4
      %s56 = int_to_ptr.vmem [resolvable:$true] %s55
      %61 = dma.hbm_to_vmem [thread:$0]  %s54, 256, %s56, [#allocation9], 128, 128, 8
    $region9: #{tpu_custom_call.1} parent=1 // pred_fallthru
      _
    // Predicated region
    $region10: #{tpu_custom_call.1} parent=1 // pred_check
      _
    $region11: #{tpu_custom_call.1} parent=1 // pred_check_branch
      %63 = sbr.rel (0) target = $region13
    $region12: #{tpu_custom_call.1} parent=1 // pred_region
      _
    $region13: #{tpu_custom_call.1} parent=1 // pred_fallthru
      _
    // Predicated region
    $region14: #{tpu_custom_call.1} parent=1 // pred_check
      _
    $region15: #{tpu_custom_call.1} parent=1 // pred_check_branch
      %65 = sbr.rel (0) target = $region17
    $region16: #{tpu_custom_call.1} parent=1 // pred_region
      _
    $region17: #{tpu_custom_call.1} parent=1 // pred_fallthru
      _
    // Predicated region
    $region18: #{tpu_custom_call.1} parent=1 // pred_check
      _
    $region19: #{tpu_custom_call.1} parent=1 // pred_check_branch
      %67 = sbr.rel (0) target = $region21
    $region20: #{tpu_custom_call.1} parent=1 // pred_region
      %69 = vsyncadd [#allocation9], 0
      %s70 = sshll.u32 %s5, 4
      %s71 = int_to_ptr.hbm [resolvable:$true] %s70
      %s72 = sshll.u32 [#allocation10], 4
      %s73 = int_to_ptr.vmem [resolvable:$true] %s72
      %78 = dma.hbm_to_vmem [thread:$0]  %s71, 2048, %s73, [#allocation9], 64, 64, 4
    $region21: #{tpu_custom_call.1} parent=1 // pred_fallthru
      _
    // Predicated region
    $region22: #{tpu_custom_call.1} parent=1 // pred_check
      _
    $region23: #{tpu_custom_call.1} parent=1 // pred_check_branch
      %80 = sbr.rel (0) target = $region25
    $region24: #{tpu_custom_call.1} parent=1 // pred_region
      _
    $region25: #{tpu_custom_call.1} parent=1 // pred_fallthru
      _
    // Predicated region
    $region26: #{tpu_custom_call.1} parent=1 // pred_check
      _
    $region27: #{tpu_custom_call.1} parent=1 // pred_check_branch
      %82 = sbr.rel (0) target = $region29
    $region28: #{tpu_custom_call.1} parent=1 // pred_region
      _
    $region29: #{tpu_custom_call.1} parent=1 // pred_fallthru
      _
    // Predicated region
    $region30: #{tpu_custom_call.1} parent=1 // pred_check
      _
    $region31: #{tpu_custom_call.1} parent=1 // pred_check_branch
      %84 = sbr.rel (0) target = $region33
    $region32: #{tpu_custom_call.1} parent=1 // pred_region
      _
    $region33: #{tpu_custom_call.1} parent=1 // pred_fallthru
      _
    // Predicated region
    $region34: #{tpu_custom_call.1} parent=1 // pred_check
      _
    $region35: #{tpu_custom_call.1} parent=1 // pred_check_branch
      %86 = sbr.rel (0) target = $region37
    $region36: #{tpu_custom_call.1} parent=1 // pred_region
      _
    $region37: #{tpu_custom_call.1} parent=1 // pred_fallthru
      _
    // Predicated region
    $region38: #{tpu_custom_call.1} parent=1 // pred_check
      _
    $region39: #{tpu_custom_call.1} parent=1 // pred_check_branch
      %88 = sbr.rel (0) target = $region41
    $region40: #{tpu_custom_call.1} parent=1 // pred_region
      _
    $region41: #{tpu_custom_call.1} parent=1 // pred_fallthru
      _
    // Predicated region
    $region42: #{tpu_custom_call.1} parent=1 // pred_check
      _
    $region43: #{tpu_custom_call.1} parent=1 // pred_check_branch
      %90 = sbr.rel (0) target = $region45
    $region44: #{tpu_custom_call.1} parent=1 // pred_region
      %92 = vsyncadd [#allocation12], 0
      %s93 = sshll.u32 %s11, 4
      %s94 = int_to_ptr.hbm [resolvable:$true] %s93
      %s95 = sshll.u32 [#allocation11], 4
      %s96 = int_to_ptr.vmem [resolvable:$true] %s95
      %101 = dma.hbm_to_vmem [thread:$0]  %s94, 1024, %s96, [#allocation12], 64, 64, 4
    $region45: #{tpu_custom_call.1} parent=1 // pred_fallthru
      _
    // Predicated region
    $region46: #{tpu_custom_call.1} parent=1 // pred_check
      _
    $region47: #{tpu_custom_call.1} parent=1 // pred_check_branch
      %103 = sbr.rel (0) target = $region49
    $region48: #{tpu_custom_call.1} parent=1 // pred_region
      %105 = vsyncadd [#allocation12], 0
      %s107 = sshll.u32 %s12, 4
      %s108 = int_to_ptr.hbm [resolvable:$true] %s107
      %s109 = sshll.u32 [#allocation13], 4
      %s110 = int_to_ptr.vmem [resolvable:$true] %s109
      %112 = dma.hbm_to_vmem [thread:$0]  %s108, 16, %s110, [#allocation12]
    $region49: #{tpu_custom_call.1} parent=1 // pred_fallthru
      _
    // Predicated region
    $region50: #{tpu_custom_call.1} parent=1 // pred_check
      _
    $region51: #{tpu_custom_call.1} parent=1 // pred_check_branch
      %114 = sbr.rel (0) target = $region53
    $region52: #{tpu_custom_call.1} parent=1 // pred_region
      %116 = vsyncadd [#allocation15], 0
      %s117 = sshll.u32 %s13, 4
      %s118 = int_to_ptr.hbm [resolvable:$true] %s117
      %s119 = sshll.u32 [#allocation14], 4
      %s120 = int_to_ptr.vmem [resolvable:$true] %s119
      %125 = dma.hbm_to_vmem [thread:$0]  %s118, 1024, %s120, [#allocation15], 64, 64, 4
    $region53: #{tpu_custom_call.1} parent=1 // pred_fallthru
      _
    // Predicated region
    $region54: #{tpu_custom_call.1} parent=1 // pred_check
      _
    $region55: #{tpu_custom_call.1} parent=1 // pred_check_branch
      %127 = sbr.rel (0) target = $region57
    $region56: #{tpu_custom_call.1} parent=1 // pred_region
      %129 = vsyncadd [#allocation15], 0
      %s131 = sshll.u32 %s14, 4
      %s132 = int_to_ptr.hbm [resolvable:$true] %s131
      %s133 = sshll.u32 [#allocation16], 4
      %s134 = int_to_ptr.vmem [resolvable:$true] %s133
      %136 = dma.hbm_to_vmem [thread:$0]  %s132, 16, %s134, [#allocation15]
    $region57: #{tpu_custom_call.1} parent=1 // pred_fallthru
      _
    // Predicated region
    $region58: #{tpu_custom_call.1} parent=1 // pred_check
      _
    $region59: #{tpu_custom_call.1} parent=1 // pred_check_branch
      %138 = sbr.rel (0) target = $region61
    $region60: #{tpu_custom_call.1} parent=1 // pred_region
      %140 = vsyncadd [#allocation18], 0
      %s142 = sshll.u32 %s15, 4
      %s143 = int_to_ptr.hbm [resolvable:$true] %s142
      %s144 = sshll.u32 [#allocation17], 4
      %s145 = int_to_ptr.vmem [resolvable:$true] %s144
      %147 = dma.hbm_to_vmem [thread:$0]  %s143, 16, %s145, [#allocation18]
    $region61: #{tpu_custom_call.1} parent=1 // pred_fallthru
      _
    // Predicated region
    $region62: #{tpu_custom_call.1} parent=1 // pred_check
      _
    $region63: #{tpu_custom_call.1} parent=1 // pred_check_branch
      %149 = sbr.rel (0) target = $region65
    $region64: #{tpu_custom_call.1} parent=1 // pred_region
      %151 = vsyncadd [#allocation18], 0
      %s153 = sshll.u32 %s16, 4
      %s154 = int_to_ptr.hbm [resolvable:$true] %s153
      %s155 = sshll.u32 [#allocation19], 4
      %s156 = int_to_ptr.vmem [resolvable:$true] %s155
      %158 = dma.hbm_to_vmem [thread:$0]  %s154, 16, %s156, [#allocation18]
    $region65: #{tpu_custom_call.1} parent=1 // pred_fallthru
      _
    // Predicated region
    $region66: #{tpu_custom_call.1} parent=1 // pred_check
      _
    $region67: #{tpu_custom_call.1} parent=1 // pred_check_branch
      %160 = sbr.rel (0) target = $region69
    $region68: #{tpu_custom_call.1} parent=1 // pred_region
      %162 = dma.done [#allocation7], 256
    $region69: #{tpu_custom_call.1} parent=1 // pred_fallthru
      _
    // Predicated region
    $region70: #{tpu_custom_call.1} parent=1 // pred_check
      _
    $region71: #{tpu_custom_call.1} parent=1 // pred_check_branch
      %164 = sbr.rel (0) target = $region73
    $region72: #{tpu_custom_call.1} parent=1 // pred_region
      %166 = dma.done [#allocation9], 256
    $region73: #{tpu_custom_call.1} parent=1 // pred_fallthru
      _
    // Predicated region
    $region74: #{tpu_custom_call.1} parent=1 // pred_check
      _
    $region75: #{tpu_custom_call.1} parent=1 // pred_check_branch
      %168 = sbr.rel (0) target = $region77
    $region76: #{tpu_custom_call.1} parent=1 // pred_region
      %170 = dma.done [#allocation9], 2048
    $region77: #{tpu_custom_call.1} parent=1 // pred_fallthru
      _
    // Predicated region
    $region78: #{tpu_custom_call.1} parent=1 // pred_check
      _
    $region79: #{tpu_custom_call.1} parent=1 // pred_check_branch
      %172 = sbr.rel (0) target = $region81
    $region80: #{tpu_custom_call.1} parent=1 // pred_region
      %174 = dma.done [#allocation12], 1024
    $region81: #{tpu_custom_call.1} parent=1 // pred_fallthru
      _
    // Predicated region
    $region82: #{tpu_custom_call.1} parent=1 // pred_check
      _
    $region83: #{tpu_custom_call.1} parent=1 // pred_check_branch
      %176 = sbr.rel (0) target = $region85
    $region84: #{tpu_custom_call.1} parent=1 // pred_region
      %178 = dma.done [#allocation12], 16
    $region85: #{tpu_custom_call.1} parent=1 // pred_fallthru
      _
    // Predicated region
    $region86: #{tpu_custom_call.1} parent=1 // pred_check
      _
    $region87: #{tpu_custom_call.1} parent=1 // pred_check_branch
      %180 = sbr.rel (0) target = $region89
    $region88: #{tpu_custom_call.1} parent=1 // pred_region
      %182 = dma.done [#allocation15], 1024
    $region89: #{tpu_custom_call.1} parent=1 // pred_fallthru
      _
    // Predicated region
    $region90: #{tpu_custom_call.1} parent=1 // pred_check
      _
    $region91: #{tpu_custom_call.1} parent=1 // pred_check_branch
      %184 = sbr.rel (0) target = $region93
    $region92: #{tpu_custom_call.1} parent=1 // pred_region
      %186 = dma.done [#allocation15], 16
    $region93: #{tpu_custom_call.1} parent=1 // pred_fallthru
      _
    // Predicated region
    $region94: #{tpu_custom_call.1} parent=1 // pred_check
      _
    $region95: #{tpu_custom_call.1} parent=1 // pred_check_branch
      %188 = sbr.rel (0) target = $region97
    $region96: #{tpu_custom_call.1} parent=1 // pred_region
      %190 = dma.done [#allocation18], 16
    $region97: #{tpu_custom_call.1} parent=1 // pred_fallthru
      _
    // Predicated region
    $region98: #{tpu_custom_call.1} parent=1 // pred_check
      _
    $region99: #{tpu_custom_call.1} parent=1 // pred_check_branch
      %192 = sbr.rel (0) target = $region101
    $region100: #{tpu_custom_call.1} parent=1 // pred_region
      %194 = dma.done [#allocation18], 16
    $region101: #{tpu_custom_call.1} parent=1 // pred_fallthru
      _
    %v195 = vld [vmem:[#allocation6] sm:$0xff]
    %v196 = vld [vmem:[#allocation6 + $0x8] sm:$0xff]
    %v197 = vld [vmem:[#allocation8] sm:$0xff]
    %v198 = vld [vmem:[#allocation8 + $0x8] sm:$0xff]
    %v199 = vld [vmem:[%s3] sm:$0x3]
    %v200 = vld [vmem:[%s4] sm:$0x3]
    %v201 = vadd.f32 %v195, %v197
    %202 = vadd.xlane.f32.xlu0 %v201
    %v203 = vpop.xlane.xlu0 %202
    %v204 = vadd.f32 %v196, %v198
    %205 = vadd.xlane.f32.xlu0 %v204
    %v206 = vpop.xlane.xlu0 %205
    %v207 = vrcp.pop 256.0
    %v208 = vmul.f32 256.0, %v207
    %v209 = vsub.f32 1.0, %v208
    %v210 = vmul.f32 %v207, %v209
    %v211 = vadd.f32 %v207, %v210
    %vm212 = vweird.f32 %v207
    %v213 = vsel %vm212, %v207, %v211
    %v214 = vmul.f32 %v203, %v213
    %v215 = vmul.f32 %v206, %v213
    %v216 = vsub.f32 %v195, %v214
    %v217 = vsub.f32 %v197, %v214
    %v218 = vsub.f32 %v196, %v215
    %v219 = vsub.f32 %v198, %v215
    %v220 = vmul.f32 %v216, %v216
    %v221 = vmul.f32 %v217, %v217
    %v222 = vmul.f32 %v218, %v218
    %v223 = vmul.f32 %v219, %v219
    %v224 = vadd.f32 %v220, %v221
    %225 = vadd.xlane.f32.xlu0 %v224
    %v226 = vpop.xlane.xlu0 %225
    %v227 = vadd.f32 %v222, %v223
    %228 = vadd.xlane.f32.xlu0 %v227
    %v229 = vpop.xlane.xlu0 %228
    %v230 = vmul.f32 %v226, %v213
    %v231 = vmul.f32 %v229, %v213
    %v232 = vadd.f32 %v230, 1e-05
    %v233 = vadd.f32 %v231, 1e-05
    %v234 = vrsqrt.pop %v232
    %v235 = vmul.f32 %v234, %v232
    %v236 = vmul.f32 %v235, %v234
    %v237 = vmul.f32 0.5, %v236
    %v238 = vsub.f32 1.5, %v237
    %v239 = vmul.f32 %v234, %v238
    %vm240 = vweird.f32 %v232
    %vm241 = vweird.f32 %v234
    %vm242 = vmor %vm240, %vm241
    %v243 = vsel %vm242, %v234, %v239
    %v244 = vrsqrt.pop %v233
    %v245 = vmul.f32 %v244, %v233
    %v246 = vmul.f32 %v245, %v244
    %v247 = vmul.f32 0.5, %v246
    %v248 = vsub.f32 1.5, %v247
    %v249 = vmul.f32 %v244, %v248
    %vm250 = vweird.f32 %v233
    %vm251 = vweird.f32 %v244
    %vm252 = vmor %vm250, %vm251
    %v253 = vsel %vm252, %v244, %v249
    %v254 = vmul.f32 %v216, %v243
    %v255 = vmul.f32 %v217, %v243
    %v256 = vmul.f32 %v218, %v253
    %v257 = vmul.f32 %v219, %v253
    %v259 = vperm.slane %v199, 0
    %v260 = vperm.slane %v199, 1
    %v263 = vmul.f32 %v254, %v259
    %v264 = vmul.f32 %v255, %v260
    %v265 = vmul.f32 %v256, %v259
    %v266 = vmul.f32 %v257, %v260
    %v268 = vperm.slane %v200, 0
    %v269 = vperm.slane %v200, 1
    %v272 = vadd.f32 %v263, %v268
    %v273 = vadd.f32 %v264, %v269
    %v274 = vadd.f32 %v265, %v268
    %v275 = vadd.f32 %v266, %v269
    %v276 = vpack.c.bf16 %v274, %v272
    %v277 = vpack.c.bf16 %v275, %v273
    %v278 = vld [vmem:[#allocation10] sm:$0xf]
    %v279 = vld [vmem:[#allocation10 + $0x4] sm:$0xf]
    %v280 = vld [vmem:[#allocation10 + $0x8] sm:$0xf]
    %v281 = vld [vmem:[#allocation10 + $0xc] sm:$0xf]
    %v282 = vld [vmem:[#allocation10 + $0x10] sm:$0xf]
    %v283 = vld [vmem:[#allocation10 + $0x14] sm:$0xf]
    %v284 = vld [vmem:[#allocation10 + $0x18] sm:$0xf]
    %v285 = vld [vmem:[#allocation10 + $0x1c] sm:$0xf]
    %v286 = vld [vmem:[#allocation10 + $0x20] sm:$0xf]
    %v287 = vld [vmem:[#allocation10 + $0x24] sm:$0xf]
    %v288 = vld [vmem:[#allocation10 + $0x28] sm:$0xf]
    %v289 = vld [vmem:[#allocation10 + $0x2c] sm:$0xf]
    %v290 = vld [vmem:[#allocation10 + $0x30] sm:$0xf]
    %v291 = vld [vmem:[#allocation10 + $0x34] sm:$0xf]
    %v292 = vld [vmem:[#allocation10 + $0x38] sm:$0xf]
    %v293 = vld [vmem:[#allocation10 + $0x3c] sm:$0xf]
    %v294 = vld [vmem:[#allocation10 + $0x40] sm:$0xf]
    %v295 = vld [vmem:[#allocation10 + $0x44] sm:$0xf]
    %v296 = vld [vmem:[#allocation10 + $0x48] sm:$0xf]
    %v297 = vld [vmem:[#allocation10 + $0x4c] sm:$0xf]
    %v298 = vld [vmem:[#allocation10 + $0x50] sm:$0xf]
    %v299 = vld [vmem:[#allocation10 + $0x54] sm:$0xf]
    %v300 = vld [vmem:[#allocation10 + $0x58] sm:$0xf]
    %v301 = vld [vmem:[#allocation10 + $0x5c] sm:$0xf]
    %v302 = vld [vmem:[#allocation10 + $0x60] sm:$0xf]
    %v303 = vld [vmem:[#allocation10 + $0x64] sm:$0xf]
    %v304 = vld [vmem:[#allocation10 + $0x68] sm:$0xf]
    %v305 = vld [vmem:[#allocation10 + $0x6c] sm:$0xf]
    %v306 = vld [vmem:[#allocation10 + $0x70] sm:$0xf]
    %v307 = vld [vmem:[#allocation10 + $0x74] sm:$0xf]
    %v308 = vld [vmem:[#allocation10 + $0x78] sm:$0xf]
    %v309 = vld [vmem:[#allocation10 + $0x7c] sm:$0xf]
    %v310 = vld [vmem:[%s6] sm:$0x1]
    %v312 = vperm.slane %v310, 0
    %v346 = vunpack.c.l.b16 %v278
    %v347 = vunpack.c.l.b16 %v279
    %v348 = vunpack.c.l.b16 %v280
    %v349 = vunpack.c.l.b16 %v281
    %v350 = vunpack.c.l.b16 %v282
    %v351 = vunpack.c.l.b16 %v283
    %v352 = vunpack.c.l.b16 %v284
    %v353 = vunpack.c.l.b16 %v285
    %v354 = vunpack.c.l.b16 %v286
    %v355 = vunpack.c.l.b16 %v287
    %v356 = vunpack.c.l.b16 %v288
    %v357 = vunpack.c.l.b16 %v289
    %v358 = vunpack.c.l.b16 %v290
    %v359 = vunpack.c.l.b16 %v291
    %v360 = vunpack.c.l.b16 %v292
    %v361 = vunpack.c.l.b16 %v293
    %v362 = vunpack.c.l.b16 %v294
    %v363 = vunpack.c.l.b16 %v295
    %v364 = vunpack.c.l.b16 %v296
    %v365 = vunpack.c.l.b16 %v297
    %v366 = vunpack.c.l.b16 %v298
    %v367 = vunpack.c.l.b16 %v299
    %v368 = vunpack.c.l.b16 %v300
    %v369 = vunpack.c.l.b16 %v301
    %v370 = vunpack.c.l.b16 %v302
    %v371 = vunpack.c.l.b16 %v303
    %v372 = vunpack.c.l.b16 %v304
    %v373 = vunpack.c.l.b16 %v305
    %v374 = vunpack.c.l.b16 %v306
    %v375 = vunpack.c.l.b16 %v307
    %v376 = vunpack.c.l.b16 %v308
    %v377 = vunpack.c.l.b16 %v309
    %v378 = vpack.c.b16 %v347, %v346
    %v379 = vpack.c.b16 %v349, %v348
    %v380 = vpack.c.b16 %v351, %v350
    %v381 = vpack.c.b16 %v353, %v352
    %v382 = vpack.c.b16 %v355, %v354
    %v383 = vpack.c.b16 %v357, %v356
    %v384 = vpack.c.b16 %v359, %v358
    %v385 = vpack.c.b16 %v361, %v360
    %v386 = vpack.c.b16 %v363, %v362
    %v387 = vpack.c.b16 %v365, %v364
    %v388 = vpack.c.b16 %v367, %v366
    %v389 = vpack.c.b16 %v369, %v368
    %v390 = vpack.c.b16 %v371, %v370
    %v391 = vpack.c.b16 %v373, %v372
    %v392 = vpack.c.b16 %v375, %v374
    %v393 = vpack.c.b16 %v377, %v376
    %410 = vmatpush.bf16.msra.mxu0 %v385
    %411 = vmatpush.bf16.msra.mxu0 %v384
    %412 = vmatpush.bf16.msra.mxu0 %v383
    %413 = vmatpush.bf16.msra.mxu0 %v382
    %414 = vmatpush.bf16.msra.mxu0 %v381
    %415 = vmatpush.bf16.msra.mxu0 %v380
    %416 = vmatpush.bf16.msra.mxu0 %v379
    %417 = vmatpush.bf16.msra.mxu0 %v378
    %418 = vmatmul.bf16.gmra.mxu0 %v276
    %v419 = vpop.f32.mrf.mxu0
    %v420 = vadd.f32 %v312, %v419
    %v421 = vpop.f32.mrf.mxu0
    %v422 = vadd.f32 %v312, %v421
    %423 = vdwg.mxu0
    %424 = vmatpush.bf16.msra.mxu0 %v393
    %425 = vmatpush.bf16.msra.mxu0 %v392
    %426 = vmatpush.bf16.msra.mxu0 %v391
    %427 = vmatpush.bf16.msra.mxu0 %v390
    %428 = vmatpush.bf16.msra.mxu0 %v389
    %429 = vmatpush.bf16.msra.mxu0 %v388
    %430 = vmatpush.bf16.msra.mxu0 %v387
    %431 = vmatpush.bf16.msra.mxu0 %v386
    %432 = vmatmul.bf16.gmra.mxu0 %v277
    %v433 = vpop.f32.mrf.mxu0
    %v434 = vadd.f32 %v420, %v433
    %v435 = vpop.f32.mrf.mxu0
    %v436 = vadd.f32 %v422, %v435
    %437 = vdwg.mxu0
    %v438 = vmul.f32 %v434, 0.5
    %v439 = vmul.f32 %v436, 0.5
    %v440 = vmul.f32 %v434, 0.70710677
    %v441 = vmul.f32 %v436, 0.70710677
    %v442 = vmul.f32 %v440, %v440
    %v443 = vmin.f32 16.0, %v442
    %v444 = vmul.f32 %v443, 2.1237322e-06
    %v445 = vadd.f32 %v444, 0.00028619796
    %v446 = vmul.f32 %v443, %v445
    %v447 = vadd.f32 %v446, 0.0036580483
    %v448 = vmul.f32 %v443, %v447
    %v449 = vadd.f32 %v448, 0.05243302
    %v450 = vmul.f32 %v443, %v449
    %v451 = vadd.f32 %v450, 0.18741608
    %v452 = vmul.f32 %v443, %v451
    %v453 = vadd.f32 %v452, 1.1283791
    %v454 = vmul.f32 %v440, %v453
    %v455 = vmul.f32 %v443, 3.8918573e-05
    %v456 = vadd.f32 %v455, 0.001143296
    %v457 = vmul.f32 %v443, %v456
    %v458 = vadd.f32 %v457, 0.014752088
    %v459 = vmul.f32 %v443, %v458
    %v460 = vadd.f32 %v459, 0.112945676
    %v461 = vmul.f32 %v443, %v460
    %v462 = vadd.f32 %v461, 0.4994258
    %v463 = vmul.f32 %v443, %v462
    %v464 = vadd.f32 %v463, 1.0
    %v465 = vrcp.pop %v464
    %v466 = vmul.f32 %v464, %v465
    %v467 = vsub.f32 1.0, %v466
    %v468 = vmul.f32 %v465, %v467
    %v469 = vadd.f32 %v465, %v468
    %vm470 = vweird.f32 %v464
    %vm471 = vweird.f32 %v465
    %vm472 = vmor %vm470, %vm471
    %v473 = vsel %vm472, %v465, %v469
    %v474 = vand.u32 2147483647, %v464
    %vm475 = vcmp.eq.f32.partialorder %v474, 8.507059e+37
    %v476 = vand.u32 %v464, 2147483648
    %v477 = vor.u32 1.1754944e-38, %v476
    %v478 = vsel %vm475, %v477, %v473
    %v479 = vmul.f32 %v454, %v478
    %v480 = vmin.f32 %v479, 1.0
    %v481 = vmax.f32 %v480, -1.0
    %v482 = vmul.f32 %v441, %v441
    %v483 = vmin.f32 16.0, %v482
    %v484 = vmul.f32 %v483, 2.1237322e-06
    %v485 = vadd.f32 %v484, 0.00028619796
    %v486 = vmul.f32 %v483, %v485
    %v487 = vadd.f32 %v486, 0.0036580483
    %v488 = vmul.f32 %v483, %v487
    %v489 = vadd.f32 %v488, 0.05243302
    %v490 = vmul.f32 %v483, %v489
    %v491 = vadd.f32 %v490, 0.18741608
    %v492 = vmul.f32 %v483, %v491
    %v493 = vadd.f32 %v492, 1.1283791
    %v494 = vmul.f32 %v441, %v493
    %v495 = vmul.f32 %v483, 3.8918573e-05
    %v496 = vadd.f32 %v495, 0.001143296
    %v497 = vmul.f32 %v483, %v496
    %v498 = vadd.f32 %v497, 0.014752088
    %v499 = vmul.f32 %v483, %v498
    %v500 = vadd.f32 %v499, 0.112945676
    %v501 = vmul.f32 %v483, %v500
    %v502 = vadd.f32 %v501, 0.4994258
    %v503 = vmul.f32 %v483, %v502
    %v504 = vadd.f32 %v503, 1.0
    %v505 = vrcp.pop %v504
    %v506 = vmul.f32 %v504, %v505
    %v507 = vsub.f32 1.0, %v506
    %v508 = vmul.f32 %v505, %v507
    %v509 = vadd.f32 %v505, %v508
    %vm510 = vweird.f32 %v504
    %vm511 = vweird.f32 %v505
    %vm512 = vmor %vm510, %vm511
    %v513 = vsel %vm512, %v505, %v509
    %v514 = vand.u32 2147483647, %v504
    %vm515 = vcmp.eq.f32.partialorder %v514, 8.507059e+37
    %v516 = vand.u32 %v504, 2147483648
    %v517 = vor.u32 1.1754944e-38, %v516
    %v518 = vsel %vm515, %v517, %v513
    %v519 = vmul.f32 %v494, %v518
    %v520 = vmin.f32 %v519, 1.0
    %v521 = vmax.f32 %v520, -1.0
    %v522 = vadd.f32 %v481, 1.0
    %v523 = vadd.f32 %v521, 1.0
    %v524 = vmul.f32 %v438, %v522
    %v525 = vmul.f32 %v439, %v523
    %v526 = vpack.c.bf16 %v525, %v524
    %v527 = vld [vmem:[%s7] sm:$0xf]
    %v528 = vld [vmem:[%s7 + $0x4] sm:$0xf]
    %v529 = vld [vmem:[%s7 + $0x8] sm:$0xf]
    %v530 = vld [vmem:[%s7 + $0xc] sm:$0xf]
    %v531 = vld [vmem:[%s7 + $0x10] sm:$0xf]
    %v532 = vld [vmem:[%s7 + $0x14] sm:$0xf]
    %v533 = vld [vmem:[%s7 + $0x18] sm:$0xf]
    %v534 = vld [vmem:[%s7 + $0x1c] sm:$0xf]
    %v535 = vld [vmem:[%s7 + $0x20] sm:$0xf]
    %v536 = vld [vmem:[%s7 + $0x24] sm:$0xf]
    %v537 = vld [vmem:[%s7 + $0x28] sm:$0xf]
    %v538 = vld [vmem:[%s7 + $0x2c] sm:$0xf]
    %v539 = vld [vmem:[%s7 + $0x30] sm:$0xf]
    %v540 = vld [vmem:[%s7 + $0x34] sm:$0xf]
    %v541 = vld [vmem:[%s7 + $0x38] sm:$0xf]
    %v542 = vld [vmem:[%s7 + $0x3c] sm:$0xf]
    %v543 = vld [vmem:[%s8] sm:$0x1]
    %v545 = vperm.slane %v543, 0
    %v563 = vunpack.c.l.b16 %v527
    %v564 = vunpack.c.l.b16 %v528
    %v565 = vunpack.c.l.b16 %v529
    %v566 = vunpack.c.l.b16 %v530
    %v567 = vunpack.c.l.b16 %v531
    %v568 = vunpack.c.l.b16 %v532
    %v569 = vunpack.c.l.b16 %v533
    %v570 = vunpack.c.l.b16 %v534
    %v571 = vunpack.c.l.b16 %v535
    %v572 = vunpack.c.l.b16 %v536
    %v573 = vunpack.c.l.b16 %v537
    %v574 = vunpack.c.l.b16 %v538
    %v575 = vunpack.c.l.b16 %v539
    %v576 = vunpack.c.l.b16 %v540
    %v577 = vunpack.c.l.b16 %v541
    %v578 = vunpack.c.l.b16 %v542
    %v579 = vpack.c.b16 %v564, %v563
    %v580 = vpack.c.b16 %v566, %v565
    %v581 = vpack.c.b16 %v568, %v567
    %v582 = vpack.c.b16 %v570, %v569
    %v583 = vpack.c.b16 %v572, %v571
    %v584 = vpack.c.b16 %v574, %v573
    %v585 = vpack.c.b16 %v576, %v575
    %v586 = vpack.c.b16 %v578, %v577
    %595 = vmatpush.bf16.msra.mxu0 %v586
    %596 = vmatpush.bf16.msra.mxu0 %v585
    %597 = vmatpush.bf16.msra.mxu0 %v584
    %598 = vmatpush.bf16.msra.mxu0 %v583
    %599 = vmatpush.bf16.msra.mxu0 %v582
    %600 = vmatpush.bf16.msra.mxu0 %v581
    %601 = vmatpush.bf16.msra.mxu0 %v580
    %602 = vmatpush.bf16.msra.mxu0 %v579
    %603 = vmatmul.bf16.gmra.mxu0 %v526
    %v604 = vpop.f32.mrf.mxu0
    %v605 = vadd.f32 %v545, %v604
    %v606 = vpop.f32.mrf.mxu0
    %v607 = vadd.f32 %v545, %v606
    %608 = vdwg.mxu0
    %v609 = vadd.f32 %v605, %v195
    %v610 = vadd.f32 %v607, %v196
    %v611 = vld [vmem:[%s9] sm:$0x1]
    %v612 = vld [vmem:[%s10] sm:$0x1]
    %613 = vadd.xlane.f32.xlu0 %v609
    %v614 = vpop.xlane.xlu0 %613
    %615 = vadd.xlane.f32.xlu0 %v610
    %v616 = vpop.xlane.xlu0 %615
    %v617 = vrcp.pop 128.0
    %v618 = vmul.f32 128.0, %v617
    %v619 = vsub.f32 1.0, %v618
    %v620 = vmul.f32 %v617, %v619
    %v621 = vadd.f32 %v617, %v620
    %vm622 = vweird.f32 %v617
    %v623 = vsel %vm622, %v617, %v621
    %v624 = vmul.f32 %v614, %v623
    %v625 = vmul.f32 %v616, %v623
    %v626 = vsub.f32 %v609, %v624
    %v627 = vsub.f32 %v610, %v625
    %v628 = vmul.f32 %v626, %v626
    %v629 = vmul.f32 %v627, %v627
    %630 = vadd.xlane.f32.xlu0 %v628
    %v631 = vpop.xlane.xlu0 %630
    %632 = vadd.xlane.f32.xlu0 %v629
    %v633 = vpop.xlane.xlu0 %632
    %v634 = vmul.f32 %v631, %v623
    %v635 = vmul.f32 %v633, %v623
    %v636 = vadd.f32 %v634, 1e-05
    %v637 = vadd.f32 %v635, 1e-05
    %v638 = vrsqrt.pop %v636
    %v639 = vmul.f32 %v638, %v636
    %v640 = vmul.f32 %v639, %v638
    %v641 = vmul.f32 0.5, %v640
    %v642 = vsub.f32 1.5, %v641
    %v643 = vmul.f32 %v638, %v642
    %vm644 = vweird.f32 %v636
    %vm645 = vweird.f32 %v638
    %vm646 = vmor %vm644, %vm645
    %v647 = vsel %vm646, %v638, %v643
    %v648 = vrsqrt.pop %v637
    %v649 = vmul.f32 %v648, %v637
    %v650 = vmul.f32 %v649, %v648
    %v651 = vmul.f32 0.5, %v650
    %v652 = vsub.f32 1.5, %v651
    %v653 = vmul.f32 %v648, %v652
    %vm654 = vweird.f32 %v637
    %vm655 = vweird.f32 %v648
    %vm656 = vmor %vm654, %vm655
    %v657 = vsel %vm656, %v648, %v653
    %v658 = vmul.f32 %v626, %v647
    %v659 = vmul.f32 %v627, %v657
    %v661 = vperm.slane %v611, 0
    %v663 = vmul.f32 %v658, %v661
    %v664 = vmul.f32 %v659, %v661
    %v666 = vperm.slane %v612, 0
    %v668 = vadd.f32 %v663, %v666
    %v669 = vadd.f32 %v664, %v666
    %v670 = vpack.c.bf16 %v669, %v668
    %v671 = vld [vmem:[#allocation11] sm:$0xf]
    %v672 = vld [vmem:[#allocation11 + $0x4] sm:$0xf]
    %v673 = vld [vmem:[#allocation11 + $0x8] sm:$0xf]
    %v674 = vld [vmem:[#allocation11 + $0xc] sm:$0xf]
    %v675 = vld [vmem:[#allocation11 + $0x10] sm:$0xf]
    %v676 = vld [vmem:[#allocation11 + $0x14] sm:$0xf]
    %v677 = vld [vmem:[#allocation11 + $0x18] sm:$0xf]
    %v678 = vld [vmem:[#allocation11 + $0x1c] sm:$0xf]
    %v679 = vld [vmem:[#allocation11 + $0x20] sm:$0xf]
    %v680 = vld [vmem:[#allocation11 + $0x24] sm:$0xf]
    %v681 = vld [vmem:[#allocation11 + $0x28] sm:$0xf]
    %v682 = vld [vmem:[#allocation11 + $0x2c] sm:$0xf]
    %v683 = vld [vmem:[#allocation11 + $0x30] sm:$0xf]
    %v684 = vld [vmem:[#allocation11 + $0x34] sm:$0xf]
    %v685 = vld [vmem:[#allocation11 + $0x38] sm:$0xf]
    %v686 = vld [vmem:[#allocation11 + $0x3c] sm:$0xf]
    %v687 = vld [vmem:[#allocation13] sm:$0x1]
    %v689 = vperm.slane %v687, 0
    %v707 = vunpack.c.l.b16 %v671
    %v708 = vunpack.c.l.b16 %v672
    %v709 = vunpack.c.l.b16 %v673
    %v710 = vunpack.c.l.b16 %v674
    %v711 = vunpack.c.l.b16 %v675
    %v712 = vunpack.c.l.b16 %v676
    %v713 = vunpack.c.l.b16 %v677
    %v714 = vunpack.c.l.b16 %v678
    %v715 = vunpack.c.l.b16 %v679
    %v716 = vunpack.c.l.b16 %v680
    %v717 = vunpack.c.l.b16 %v681
    %v718 = vunpack.c.l.b16 %v682
    %v719 = vunpack.c.l.b16 %v683
    %v720 = vunpack.c.l.b16 %v684
    %v721 = vunpack.c.l.b16 %v685
    %v722 = vunpack.c.l.b16 %v686
    %v723 = vpack.c.b16 %v708, %v707
    %v724 = vpack.c.b16 %v710, %v709
    %v725 = vpack.c.b16 %v712, %v711
    %v726 = vpack.c.b16 %v714, %v713
    %v727 = vpack.c.b16 %v716, %v715
    %v728 = vpack.c.b16 %v718, %v717
    %v729 = vpack.c.b16 %v720, %v719
    %v730 = vpack.c.b16 %v722, %v721
    %739 = vmatpush.bf16.msra.mxu0 %v730
    %740 = vmatpush.bf16.msra.mxu0 %v729
    %741 = vmatpush.bf16.msra.mxu0 %v728
    %742 = vmatpush.bf16.msra.mxu0 %v727
    %743 = vmatpush.bf16.msra.mxu0 %v726
    %744 = vmatpush.bf16.msra.mxu0 %v725
    %745 = vmatpush.bf16.msra.mxu0 %v724
    %746 = vmatpush.bf16.msra.mxu0 %v723
    %747 = vmatmul.bf16.gmra.mxu0 %v670
    %v748 = vpop.f32.mrf.mxu0
    %v749 = vadd.f32 %v689, %v748
    %v750 = vpop.f32.mrf.mxu0
    %v751 = vadd.f32 %v689, %v750
    %752 = vdwg.mxu0
    %v753 = vmul.f32 %v749, 0.5
    %v754 = vmul.f32 %v751, 0.5
    %v755 = vmul.f32 %v749, 0.70710677
    %v756 = vmul.f32 %v751, 0.70710677
    %v757 = vmul.f32 %v755, %v755
    %v758 = vmin.f32 16.0, %v757
    %v759 = vmul.f32 %v758, 2.1237322e-06
    %v760 = vadd.f32 %v759, 0.00028619796
    %v761 = vmul.f32 %v758, %v760
    %v762 = vadd.f32 %v761, 0.0036580483
    %v763 = vmul.f32 %v758, %v762
    %v764 = vadd.f32 %v763, 0.05243302
    %v765 = vmul.f32 %v758, %v764
    %v766 = vadd.f32 %v765, 0.18741608
    %v767 = vmul.f32 %v758, %v766
    %v768 = vadd.f32 %v767, 1.1283791
    %v769 = vmul.f32 %v755, %v768
    %v770 = vmul.f32 %v758, 3.8918573e-05
    %v771 = vadd.f32 %v770, 0.001143296
    %v772 = vmul.f32 %v758, %v771
    %v773 = vadd.f32 %v772, 0.014752088
    %v774 = vmul.f32 %v758, %v773
    %v775 = vadd.f32 %v774, 0.112945676
    %v776 = vmul.f32 %v758, %v775
    %v777 = vadd.f32 %v776, 0.4994258
    %v778 = vmul.f32 %v758, %v777
    %v779 = vadd.f32 %v778, 1.0
    %v780 = vrcp.pop %v779
    %v781 = vmul.f32 %v779, %v780
    %v782 = vsub.f32 1.0, %v781
    %v783 = vmul.f32 %v780, %v782
    %v784 = vadd.f32 %v780, %v783
    %vm785 = vweird.f32 %v779
    %vm786 = vweird.f32 %v780
    %vm787 = vmor %vm785, %vm786
    %v788 = vsel %vm787, %v780, %v784
    %v789 = vand.u32 2147483647, %v779
    %vm790 = vcmp.eq.f32.partialorder %v789, 8.507059e+37
    %v791 = vand.u32 %v779, 2147483648
    %v792 = vor.u32 1.1754944e-38, %v791
    %v793 = vsel %vm790, %v792, %v788
    %v794 = vmul.f32 %v769, %v793
    %v795 = vmin.f32 %v794, 1.0
    %v796 = vmax.f32 %v795, -1.0
    %v797 = vmul.f32 %v756, %v756
    %v798 = vmin.f32 16.0, %v797
    %v799 = vmul.f32 %v798, 2.1237322e-06
    %v800 = vadd.f32 %v799, 0.00028619796
    %v801 = vmul.f32 %v798, %v800
    %v802 = vadd.f32 %v801, 0.0036580483
    %v803 = vmul.f32 %v798, %v802
    %v804 = vadd.f32 %v803, 0.05243302
    %v805 = vmul.f32 %v798, %v804
    %v806 = vadd.f32 %v805, 0.18741608
    %v807 = vmul.f32 %v798, %v806
    %v808 = vadd.f32 %v807, 1.1283791
    %v809 = vmul.f32 %v756, %v808
    %v810 = vmul.f32 %v798, 3.8918573e-05
    %v811 = vadd.f32 %v810, 0.001143296
    %v812 = vmul.f32 %v798, %v811
    %v813 = vadd.f32 %v812, 0.014752088
    %v814 = vmul.f32 %v798, %v813
    %v815 = vadd.f32 %v814, 0.112945676
    %v816 = vmul.f32 %v798, %v815
    %v817 = vadd.f32 %v816, 0.4994258
    %v818 = vmul.f32 %v798, %v817
    %v819 = vadd.f32 %v818, 1.0
    %v820 = vrcp.pop %v819
    %v821 = vmul.f32 %v819, %v820
    %v822 = vsub.f32 1.0, %v821
    %v823 = vmul.f32 %v820, %v822
    %v824 = vadd.f32 %v820, %v823
    %vm825 = vweird.f32 %v819
    %vm826 = vweird.f32 %v820
    %vm827 = vmor %vm825, %vm826
    %v828 = vsel %vm827, %v820, %v824
    %v829 = vand.u32 2147483647, %v819
    %vm830 = vcmp.eq.f32.partialorder %v829, 8.507059e+37
    %v831 = vand.u32 %v819, 2147483648
    %v832 = vor.u32 1.1754944e-38, %v831
    %v833 = vsel %vm830, %v832, %v828
    %v834 = vmul.f32 %v809, %v833
    %v835 = vmin.f32 %v834, 1.0
    %v836 = vmax.f32 %v835, -1.0
    %v837 = vadd.f32 %v796, 1.0
    %v838 = vadd.f32 %v836, 1.0
    %v839 = vmul.f32 %v753, %v837
    %v840 = vmul.f32 %v754, %v838
    %v841 = vpack.c.bf16 %v840, %v839
    %v842 = vld [vmem:[#allocation14] sm:$0xf]
    %v843 = vld [vmem:[#allocation14 + $0x4] sm:$0xf]
    %v844 = vld [vmem:[#allocation14 + $0x8] sm:$0xf]
    %v845 = vld [vmem:[#allocation14 + $0xc] sm:$0xf]
    %v846 = vld [vmem:[#allocation14 + $0x10] sm:$0xf]
    %v847 = vld [vmem:[#allocation14 + $0x14] sm:$0xf]
    %v848 = vld [vmem:[#allocation14 + $0x18] sm:$0xf]
    %v849 = vld [vmem:[#allocation14 + $0x1c] sm:$0xf]
    %v850 = vld [vmem:[#allocation14 + $0x20] sm:$0xf]
    %v851 = vld [vmem:[#allocation14 + $0x24] sm:$0xf]
    %v852 = vld [vmem:[#allocation14 + $0x28] sm:$0xf]
    %v853 = vld [vmem:[#allocation14 + $0x2c] sm:$0xf]
    %v854 = vld [vmem:[#allocation14 + $0x30] sm:$0xf]
    %v855 = vld [vmem:[#allocation14 + $0x34] sm:$0xf]
    %v856 = vld [vmem:[#allocation14 + $0x38] sm:$0xf]
    %v857 = vld [vmem:[#allocation14 + $0x3c] sm:$0xf]
    %v858 = vld [vmem:[#allocation16] sm:$0x1]
    %v860 = vperm.slane %v858, 0
    %v878 = vunpack.c.l.b16 %v842
    %v879 = vunpack.c.l.b16 %v843
    %v880 = vunpack.c.l.b16 %v844
    %v881 = vunpack.c.l.b16 %v845
    %v882 = vunpack.c.l.b16 %v846
    %v883 = vunpack.c.l.b16 %v847
    %v884 = vunpack.c.l.b16 %v848
    %v885 = vunpack.c.l.b16 %v849
    %v886 = vunpack.c.l.b16 %v850
    %v887 = vunpack.c.l.b16 %v851
    %v888 = vunpack.c.l.b16 %v852
    %v889 = vunpack.c.l.b16 %v853
    %v890 = vunpack.c.l.b16 %v854
    %v891 = vunpack.c.l.b16 %v855
    %v892 = vunpack.c.l.b16 %v856
    %v893 = vunpack.c.l.b16 %v857
    %v894 = vpack.c.b16 %v879, %v878
    %v895 = vpack.c.b16 %v881, %v880
    %v896 = vpack.c.b16 %v883, %v882
    %v897 = vpack.c.b16 %v885, %v884
    %v898 = vpack.c.b16 %v887, %v886
    %v899 = vpack.c.b16 %v889, %v888
    %v900 = vpack.c.b16 %v891, %v890
    %v901 = vpack.c.b16 %v893, %v892
    %910 = vmatpush.bf16.msra.mxu0 %v901
    %911 = vmatpush.bf16.msra.mxu0 %v900
    %912 = vmatpush.bf16.msra.mxu0 %v899
    %913 = vmatpush.bf16.msra.mxu0 %v898
    %914 = vmatpush.bf16.msra.mxu0 %v897
    %915 = vmatpush.bf16.msra.mxu0 %v896
    %916 = vmatpush.bf16.msra.mxu0 %v895
    %917 = vmatpush.bf16.msra.mxu0 %v894
    %918 = vmatmul.bf16.gmra.mxu0 %v841
    %v919 = vpop.f32.mrf.mxu0
    %v920 = vadd.f32 %v860, %v919
    %v921 = vpop.f32.mrf.mxu0
    %v922 = vadd.f32 %v860, %v921
    %923 = vdwg.mxu0
    %v924 = vadd.f32 %v920, %v609
    %v925 = vadd.f32 %v922, %v610
    %v926 = vld [vmem:[#allocation17] sm:$0x1]
    %v927 = vld [vmem:[#allocation19] sm:$0x1]
    %928 = vadd.xlane.f32.xlu0 %v924
    %v929 = vpop.xlane.xlu0 %928
    %930 = vadd.xlane.f32.xlu0 %v925
    %v931 = vpop.xlane.xlu0 %930
    %v932 = vmul.f32 %v929, %v623
    %v933 = vmul.f32 %v931, %v623
    %v934 = vsub.f32 %v924, %v932
    %v935 = vsub.f32 %v925, %v933
    %v936 = vmul.f32 %v934, %v934
    %v937 = vmul.f32 %v935, %v935
    %938 = vadd.xlane.f32.xlu0 %v936
    %v939 = vpop.xlane.xlu0 %938
    %940 = vadd.xlane.f32.xlu0 %v937
    %v941 = vpop.xlane.xlu0 %940
    %v942 = vmul.f32 %v939, %v623
    %v943 = vmul.f32 %v941, %v623
    %v944 = vadd.f32 %v942, 1e-05
    %v945 = vadd.f32 %v943, 1e-05
    %v946 = vrsqrt.pop %v944
    %v947 = vmul.f32 %v946, %v944
    %v948 = vmul.f32 %v947, %v946
    %v949 = vmul.f32 0.5, %v948
    %v950 = vsub.f32 1.5, %v949
    %v951 = vmul.f32 %v946, %v950
    %vm952 = vweird.f32 %v944
    %vm953 = vweird.f32 %v946
    %vm954 = vmor %vm952, %vm953
    %v955 = vsel %vm954, %v946, %v951
    %v956 = vrsqrt.pop %v945
    %v957 = vmul.f32 %v956, %v945
    %v958 = vmul.f32 %v957, %v956
    %v959 = vmul.f32 0.5, %v958
    %v960 = vsub.f32 1.5, %v959
    %v961 = vmul.f32 %v956, %v960
    %vm962 = vweird.f32 %v945
    %vm963 = vweird.f32 %v956
    %vm964 = vmor %vm962, %vm963
    %v965 = vsel %vm964, %v956, %v961
    %v966 = vmul.f32 %v934, %v955
    %v967 = vmul.f32 %v935, %v965
    %v969 = vperm.slane %v926, 0
    %v971 = vmul.f32 %v966, %v969
    %v972 = vmul.f32 %v967, %v969
    %v974 = vperm.slane %v927, 0
    %v976 = vadd.f32 %v971, %v974
    %v977 = vadd.f32 %v972, %v974
    %978 = vst [vmem:[#allocation2] sm:$0xff] %v976
    %979 = vst [vmem:[#allocation2 + $0x8] sm:$0xff] %v977
    %s980 = smul.u32 0, 16
    loop: start=0, step=1, limit=16
    $region102: #{tpu_custom_call.1} parent=1 // loop_pre_header
      _
    $region103: #{tpu_custom_call.1} parent=1 // loop_header
      %s982 = sphi 0, %s986
      %p983 = scmp.ge.s32.totalorder %s982, 16
    $region104: #{tpu_custom_call.1} parent=1 // loop_header_branch
      %985 = sbr.rel (%p983) target = $region108
    $region105: #{tpu_custom_call.1} parent=1 // loop_body
      %s987 = sadd.s32 %s980, %s982
      %s988 = sld [smem:[#allocation5 + %s987]]
      %p989 = scmp.ge.s32.totalorder %s988, 0
      // Predicated region
      $region109: #{tpu_custom_call.1} parent=105 // pred_check
        %p990 = pneg %p989
      $region110: #{tpu_custom_call.1} parent=105 // pred_check_branch
        %992 = sbr.rel (%p990) target = $region112
      $region111: #{tpu_custom_call.1} parent=105 // pred_region
        %s993 = scalar_lea.vmem [#allocation2], %s982
        %s994 = scalar_lea.hbm %s18, %s988
        // Predicated region
        $region113: #{tpu_custom_call.1} parent=111 // pred_check
          _
        $region114: #{tpu_custom_call.1} parent=111 // pred_check_branch
          %996 = sbr.rel target = $region116
        $region115: #{tpu_custom_call.1} parent=111 // pred_region
          %997 = sst [smem:[#allocation22]] [#allocation21]
          %998 = sst [smem:[#allocation23]] [#allocation20]
        $region116: #{tpu_custom_call.1} parent=111 // pred_fallthru
          _
        %1000 = shalt.err (0)
        %s1002 = sshll.u32 %s993, 4
        %s1003 = int_to_ptr.vmem [resolvable:$true] %s1002
        %s1004 = sshll.u32 %s994, 4
        %s1005 = int_to_ptr.hbm [resolvable:$true] %s1004
        %1007 = dma.vmem_to_hbm [thread:$0]  %s1003, 16, %s1005, [#allocation3]
        %1009 = dma.done [#allocation3], 16
      $region112: #{tpu_custom_call.1} parent=105 // pred_fallthru
        _
    $region106: #{tpu_custom_call.1} parent=1 // loop_footer
      %s986 = sadd.s32 1, %s982
    $region107: #{tpu_custom_call.1} parent=1 // loop_footer_branch
      %981 = sbr.rel target = $region103
    $region108: #{tpu_custom_call.1} parent=1 // loop_exit
      _
    %1010 = vsyncpa [#allocation7], 1
    %1011 = vsyncpa [#allocation9], 1
    %1012 = vsyncpa [#allocation12], 1
    %1013 = vsyncpa [#allocation15], 1
    %1014 = vsyncpa [#allocation18], 1
  %1015 = vsyncmov [#allocation3]
  %s1016 = vpop.sfrf %1015
  %p1017 = scmp.eq.s32.totalorder %s1016, 0
  %p1018 = pneg %p1017
  %1020 = shalt.err (%p1018)

</llo_original>
